<compile_context>
chip_gen: v7x
topology: tpu7x:2x2x1
jax: 0.10.0
libtpu: 0.0.40
codegen_flags: <defaults>
</compile_context>

<pallas_src>
import functools

import numpy as np

import jax
import jax.numpy as jnp
from jax.experimental import pallas as pl
from jax.experimental.pallas import tpu as pltpu


# -----------------------------------------------------------------------------
# Fused VAE forward kernel (whole batch, single grid step)
# -----------------------------------------------------------------------------
def _vae_kernel(xe0_ref, xo0_ref, xe1_ref, eps_ref,
                a1_ref, b1_ref, a2_ref, b2_ref,
                wfc_ref, bfc_ref, wfd_ref, bfd_ref,
                v2_ref, bv2_ref, v1_ref, bv1_ref,
                rec_ref, muvl_ref, *, n, c, latent):
    f32, bf16 = jnp.float32, jnp.bfloat16
    L = latent
    rw = 14 * c                 # NHWC row width of the 7x7x2c and 14x14xc maps
    s2w = 32 * c                # space-to-depth row width of padded 14x14xc map

    def mm(a, b):
        return jnp.dot(a, b, preferred_element_type=f32)

    relu = lambda v: jnp.maximum(v, 0.0)

    # ---------------- encoder conv1 (28x28x1 -> 14x14xc) ----------------
    # Even / odd output rows are emitted directly into the space-to-depth layout
    # of the zero-padded conv2 input (disjoint column sets), so no shuffles.
    e_rows = relu(mm(xe0_ref[...], a1_ref[0]) + mm(xo0_ref[...], a1_ref[1])
                  + b1_ref[0:1, :])                                     # (7n, 32c)
    o_rows = relu(mm(xo0_ref[...], a1_ref[2]) + mm(xe1_ref[...], a1_ref[3])
                  + b1_ref[1:2, :])                                     # (7n, 32c)

    # ---------------- encoder conv2 (14x14xc -> 7x7x2c) ----------------
    zrow = jnp.zeros((1, s2w), f32)
    x2 = [jnp.concatenate([e_rows[7 * i:7 * i + 7], zrow], axis=0)
          + jnp.concatenate([zrow, o_rows[7 * i:7 * i + 7]], axis=0)
          for i in range(n)]                                            # n x (8, 32c)
    x20 = jnp.concatenate([x2[i][0:7] for i in range(n)], 0).astype(bf16)
    x21 = jnp.concatenate([x2[i][1:8] for i in range(n)], 0).astype(bf16)
    h2 = relu(mm(x20, a2_ref[0]) + mm(x21, a2_ref[1]) + b2_ref[...])    # (7n, 14c)

    # -------- fc_mu / fc_logvar (stacked) + reparam sample + decoder fc --------
    hflat = jnp.concatenate(
        [jnp.concatenate([h2[7 * i + r:7 * i + r + 1, :] for r in range(7)], axis=1)
         for i in range(n)], axis=0)                                    # (n, 98c)
    z = mm(hflat.astype(bf16), wfc_ref[...]) + bfc_ref[...]             # (n, 2L)
    mu, logvar = z[:, :L], z[:, L:]
    # TODO(synk): torch samples eps with in-place normal_(); eps is an explicit
    # input here (pltpu.prng_random_bits could generate it in-kernel instead).
    lat = mu + eps_ref[...] * jnp.exp(0.5 * logvar)                     # (n, L)
    muvl_ref[...] = z
    d = mm(lat.astype(bf16), wfd_ref[...]) + bfd_ref[...]               # (n, 98c)

    # ---------------- decoder convT2 (7x7x2c -> 14x14xc) ----------------
    zr = jnp.zeros((1, rw), f32)
    dpad = [jnp.concatenate([zr] + [d[i:i + 1, r * rw:(r + 1) * rw] for r in range(7)]
                            + [zr], axis=0) for i in range(n)]          # n x (9, 14c)
    t0 = jnp.concatenate([dpad[i][0:7] for i in range(n)], 0).astype(bf16)
    t1 = jnp.concatenate([dpad[i][1:8] for i in range(n)], 0).astype(bf16)
    t2 = jnp.concatenate([dpad[i][2:9] for i in range(n)], 0).astype(bf16)
    p0 = relu(mm(t0, v2_ref[3]) + mm(t1, v2_ref[1]) + bv2_ref[...])     # rows 0,2,..,12
    p1 = relu(mm(t1, v2_ref[2]) + mm(t2, v2_ref[0]) + bv2_ref[...])     # rows 1,3,..,13

    # ---------------- decoder convT1 (14x14xc -> 28x28x1) ----------------
    # Four output row-phase groups (rows 4t+g); groups are packed along lanes so
    # the single reconstruction store is 128 lanes wide.
    p1z = jnp.concatenate([jnp.concatenate([zr, p1[7 * i:7 * i + 6]], 0)
                           for i in range(n)], 0).astype(bf16)          # row t -> P1[t-1]
    p0z = jnp.concatenate([jnp.concatenate([p0[7 * i + 1:7 * i + 7], zr], 0)
                           for i in range(n)], 0).astype(bf16)          # row t -> P0[t+1]
    p0b, p1b = p0.astype(bf16), p1.astype(bf16)
    ga = mm(p1z, v1_ref[3]) + mm(p0b, v1_ref[1])                        # rows 4t
    gc = mm(p0b, v1_ref[2]) + mm(p1b, v1_ref[0])                        # rows 4t+1
    gb = mm(p0b, v1_ref[3]) + mm(p1b, v1_ref[1])                        # rows 4t+2
    gd = mm(p1b, v1_ref[2]) + mm(p0z, v1_ref[0])                        # rows 4t+3
    bu = bv1_ref[...]
    rec_ref[...] = jax.nn.sigmoid(
        jnp.concatenate([ga + bu, gc + bu, gb + bu, gd + bu], axis=1))  # (7n, 128)


# -----------------------------------------------------------------------------
# One-time weight packing (all stride / phase / layout structure folded here)
# -----------------------------------------------------------------------------
def _pack_enc_conv1(w, b, c):
    """Conv2d(1->c, k=4, s=2, p=1), consumed as even/odd space-to-depth row
    slabs of the padded 28x28 input, emitting directly into the space-to-depth
    layout of the zero-padded conv2 input (rows of 32c)."""
    w = np.asarray(w, np.float32)                 # (c, 1, 4, 4)
    b = np.asarray(b, np.float32)                 # (c,)
    a = np.zeros((4, 60, 32 * c), np.float32)     # [even tap0, even tap1, odd tap0, odd tap1]
    bb = np.zeros((2, 32 * c), np.float32)        # [even bias, odd bias]
    for grp, dhh in ((0, 1), (1, 0)):             # even output rows -> dhh=1, odd -> dhh=0
        for wx in range(14):
            jj, dww = (wx + 1) // 2, (wx + 1) % 2
            for co in range(c):
                oc = jj * 4 * c + dhh * 2 * c + dww * c + co
                bb[grp, oc] = b[co]
                for kh in range(4):
                    for kw in range(4):
                        q = (wx + kw // 2) * 4 + (kh % 2) * 2 + (kw % 2)
                        a[grp * 2 + kh // 2, q, oc] = w[co, 0, kh, kw]
    return a, bb


def _pack_enc_conv2(w, b, c):
    """Conv2d(c->2c, k=4, s=2, p=1), consumed as two space-to-depth row taps,
    emitting NHWC-flat (7*2c)-wide output rows."""
    w = np.asarray(w, np.float32)                 # (2c, c, 4, 4)
    b = np.asarray(b, np.float32)                 # (2c,)
    a = np.zeros((2, 32 * c, 14 * c), np.float32)
    bb = np.zeros((1, 14 * c), np.float32)
    for wx in range(7):
        for co in range(2 * c):
            oc = wx * 2 * c + co
            bb[0, oc] = b[co]
            for kh in range(4):
                for kw in range(4):
                    for ci in range(c):
                        q = (wx + kw // 2) * 4 * c + (kh % 2) * 2 * c + (kw % 2) * c + ci
                        a[kh // 2, q, oc] = w[co, ci, kh, kw]
    return a, bb


def _pack_tconv(w, b, win, wout, out_width):
    """ConvTranspose2d(k=4, s=2, p=1) row-tap operators: V[kh] maps one NHWC
    input row (win*cin) to one NHWC output row (wout*cout, zero-padded to
    out_width lanes); the kernel picks the two kh taps per output row phase."""
    w = np.asarray(w, np.float32)                 # (cin, cout, 4, 4)
    b = np.asarray(b, np.float32)                 # (cout,)
    cin, cout = w.shape[0], w.shape[1]
    v = np.zeros((4, win * cin, out_width), np.float32)
    bb = np.zeros((1, out_width), np.float32)
    for ox in range(wout):
        for co in range(cout):
            oc = ox * cout + co
            bb[0, oc] = b[co]
            for ix in range(win):
                kw = ox - 2 * ix + 1
                if 0 <= kw <= 3:
                    for kh in range(4):
                        for ci in range(cin):
                            v[kh, ix * cin + ci, oc] = w[ci, co, kh, kw]
    return v, bb


def pack_params(p, capacity, latent_dims):
    c, L = capacity, latent_dims
    f32, bf16 = jnp.float32, jnp.bfloat16
    P = {}
    a1, b1 = _pack_enc_conv1(p["e_conv1_w"], p["e_conv1_b"], c)
    a2, b2 = _pack_enc_conv2(p["e_conv2_w"], p["e_conv2_b"], c)
    P["a1"], P["b1"] = jnp.asarray(a1, bf16), jnp.asarray(b1, f32)
    P["a2"], P["b2"] = jnp.asarray(a2, bf16), jnp.asarray(b2, f32)

    def enc_fc(w):  # torch NCHW-flat columns -> our (h, w, c)-flat rows
        w = np.asarray(w, np.float32).reshape(L, 2 * c, 7, 7)
        return w.transpose(2, 3, 1, 0).reshape(2 * c * 49, L)

    P["wfc"] = jnp.asarray(
        np.concatenate([enc_fc(p["fc_mu_w"]), enc_fc(p["fc_lv_w"])], axis=1), bf16)
    P["bfc"] = jnp.asarray(
        np.concatenate([np.asarray(p["fc_mu_b"], np.float32),
                        np.asarray(p["fc_lv_b"], np.float32)])[None], f32)

    wd = np.asarray(p["d_fc_w"], np.float32).reshape(2 * c, 7, 7, L)
    P["wfd"] = jnp.asarray(wd.transpose(1, 2, 0, 3).reshape(2 * c * 49, L).T, bf16)
    bd = np.asarray(p["d_fc_b"], np.float32).reshape(2 * c, 7, 7)
    P["bfd"] = jnp.asarray(bd.transpose(1, 2, 0).reshape(1, 2 * c * 49), f32)

    v2, bv2 = _pack_tconv(p["d_conv2_w"], p["d_conv2_b"], win=7, wout=14, out_width=14 * c)
    v1, bv1 = _pack_tconv(p["d_conv1_w"], p["d_conv1_b"], win=14, wout=28, out_width=32)
    P["v2"], P["bv2"] = jnp.asarray(v2, bf16), jnp.asarray(bv2, f32)
    P["v1"], P["bv1"] = jnp.asarray(v1, bf16), jnp.asarray(bv1, f32)
    return P


# -----------------------------------------------------------------------------
# VAE forward: one pallas_call for the whole batch
# -----------------------------------------------------------------------------
def vae_forward(packed, x, eps, *, capacity, latent_dims):
    c, L = capacity, latent_dims
    n = x.shape[0]
    f32, bf16 = jnp.float32, jnp.bfloat16

    # One-time input prep (pad + space-to-depth + even/odd row-tap split).
    xp = jnp.pad(x.reshape(n, 28, 28).astype(f32), ((0, 0), (1, 1), (1, 1)))
    xs = xp.reshape(n, 15, 2, 15, 2).transpose(0, 1, 3, 2, 4).reshape(n, 15, 60)
    xe0 = xs[:, 0:13:2, :].reshape(n * 7, 60).astype(bf16)
    xo0 = xs[:, 1:14:2, :].reshape(n * 7, 60).astype(bf16)
    xe1 = xs[:, 2:15:2, :].reshape(n * 7, 60).astype(bf16)

    inputs = (xe0, xo0, xe1, eps.astype(f32),
              packed["a1"], packed["b1"], packed["a2"], packed["b2"],
              packed["wfc"], packed["bfc"], packed["wfd"], packed["bfd"],
              packed["v2"], packed["bv2"], packed["v1"], packed["bv1"])

    def spec(a):
        nd = a.ndim
        return pl.BlockSpec(a.shape, lambda i, _nd=nd: (0,) * _nd)

    rec, muvl = pl.pallas_call(
        functools.partial(_vae_kernel, n=n, c=c, latent=L),
        out_shape=(jax.ShapeDtypeStruct((n * 7, 128), f32),
                   jax.ShapeDtypeStruct((n, 2 * L), f32)),
        grid=(1,),
        in_specs=[spec(a) for a in inputs],
        out_specs=(pl.BlockSpec((n * 7, 128), lambda i: (0, 0)),
                   pl.BlockSpec((n, 2 * L), lambda i: (0, 0))),
        compiler_params=pltpu.CompilerParams(
            dimension_semantics=("arbitrary",),
            vmem_limit_bytes=32 * 1024 * 1024),
    )(*inputs)

    # De-interleave the four lane-packed row-phase groups (output row = 4t + g),
    # drop the 4-lane padding, and emit NCHW once.
    x_recon = rec.reshape(n, 7, 4, 32)[:, :, :, :28].reshape(n, 1, 28, 28)
    return x_recon, muvl[:, :L], muvl[:, L:]


# -----------------------------------------------------------------------------
# Parameters (torch-equivalent layout / init) + pure-JAX f32 reference
# -----------------------------------------------------------------------------
def init_params(key, capacity, latent_dims):
    c = capacity
    ks = jax.random.split(key, 14)

    def w(k, shape, fan_in):
        scale = 1.0 / jnp.sqrt(jnp.float32(fan_in))
        return jax.random.uniform(k, shape, jnp.float32, -scale, scale)

    p = {}
    p["e_conv1_w"] = w(ks[0], (c, 1, 4, 4), 1 * 16)
    p["e_conv1_b"] = w(ks[1], (c,), 1 * 16)
    p["e_conv2_w"] = w(ks[2], (2 * c, c, 4, 4), c * 16)
    p["e_conv2_b"] = w(ks[3], (2 * c,), c * 16)
    p["fc_mu_w"] = w(ks[4], (latent_dims, 2 * c * 7 * 7), 2 * c * 49)
    p["fc_mu_b"] = w(ks[5], (latent_dims,), 2 * c * 49)
    p["fc_lv_w"] = w(ks[6], (latent_dims, 2 * c * 7 * 7), 2 * c * 49)
    p["fc_lv_b"] = w(ks[7], (latent_dims,), 2 * c * 49)
    p["d_fc_w"] = w(ks[8], (2 * c * 7 * 7, latent_dims), latent_dims)
    p["d_fc_b"] = w(ks[9], (2 * c * 7 * 7,), latent_dims)
    p["d_conv2_w"] = w(ks[10], (2 * c, c, 4, 4), 2 * c * 16)   # ConvT: (in, out, k, k)
    p["d_conv2_b"] = w(ks[11], (c,), 2 * c * 16)
    p["d_conv1_w"] = w(ks[12], (c, 1, 4, 4), c * 16)
    p["d_conv1_b"] = w(ks[13], (1,), c * 16)
    return p


def vae_reference(params, x, eps, capacity):
    """Pure-JAX f32 reference of the PyTorch module (for numerics check)."""
    c = capacity
    n = x.shape[0]

    def conv(h, w, b):
        y = jax.lax.conv_general_dilated(
            h, w, window_strides=(2, 2), padding=((1, 1), (1, 1)),
            dimension_numbers=("NCHW", "OIHW", "NCHW"))
        return y + b.reshape(1, -1, 1, 1)

    def convT(h, w, b):
        w_conv = jnp.flip(w, axis=(-2, -1)).transpose(1, 0, 2, 3)
        y = jax.lax.conv_general_dilated(
            h, w_conv, window_strides=(1, 1), padding=((2, 2), (2, 2)),
            lhs_dilation=(2, 2), dimension_numbers=("NCHW", "OIHW", "NCHW"))
        return y + b.reshape(1, -1, 1, 1)

    h = jax.nn.relu(conv(x, params["e_conv1_w"], params["e_conv1_b"]))
    h = jax.nn.relu(conv(h, params["e_conv2_w"], params["e_conv2_b"]))
    h = h.reshape(n, -1)
    mu = h @ params["fc_mu_w"].T + params["fc_mu_b"]
    logvar = h @ params["fc_lv_w"].T + params["fc_lv_b"]
    latent = mu + eps * jnp.exp(0.5 * logvar)
    d = (latent @ params["d_fc_w"].T + params["d_fc_b"]).reshape(n, 2 * c, 7, 7)
    d = jax.nn.relu(convT(d, params["d_conv2_w"], params["d_conv2_b"]))
    x_recon = jax.nn.sigmoid(convT(d, params["d_conv1_w"], params["d_conv1_b"]))
    return x_recon, mu, logvar


if __name__ == "__main__":
    capacity = 4
    latent_dims = 8
    batch = 2

    key = jax.random.PRNGKey(0)
    k_x, k_eps, k_param = jax.random.split(key, 3)

    # 28x28 input is pinned by the module (fc expects 2c*7*7 after two stride-2 convs).
    x = jax.random.normal(k_x, (batch, 1, 28, 28), dtype=jnp.float32)
    eps = jax.random.normal(k_eps, (batch, latent_dims), dtype=jnp.float32)
    params = init_params(k_param, capacity, latent_dims)
    packed = pack_params(params, capacity, latent_dims)

    fwd = jax.jit(functools.partial(vae_forward, capacity=capacity,
                                    latent_dims=latent_dims))
    x_recon, mu, logvar = fwd(packed, x, eps)
    jax.block_until_ready((x_recon, mu, logvar))

    assert x_recon.shape == (batch, 1, 28, 28)
    assert mu.shape == (batch, latent_dims)
    assert logvar.shape == (batch, latent_dims)
    assert bool(jnp.all(x_recon >= 0.0) & jnp.all(x_recon <= 1.0))

    # Numerics check against the pure-JAX f32 reference (bf16 MXU tolerance).
    ref_recon, ref_mu, ref_lv = vae_reference(params, x, eps, capacity)
    assert bool(jnp.allclose(mu, ref_mu, rtol=3e-2, atol=3e-2)), "mu mismatch"
    assert bool(jnp.allclose(logvar, ref_lv, rtol=3e-2, atol=3e-2)), "logvar mismatch"
    assert bool(jnp.allclose(x_recon, ref_recon, rtol=3e-2, atol=3e-2)), "x_recon mismatch"

    print("KERNEL_OK")
</pallas_src>

<mosaic_0001>
module attributes {stable_mosaic.version = 11 : i64} {
  func.func @_vae_kernel(%arg0: i32, %arg1: memref<14x60xbf16, #tpu.memory_space<vmem>>, %arg2: memref<14x60xbf16, #tpu.memory_space<vmem>>, %arg3: memref<14x60xbf16, #tpu.memory_space<vmem>>, %arg4: memref<2x8xf32, #tpu.memory_space<vmem>>, %arg5: memref<4x60x128xbf16, #tpu.memory_space<vmem>>, %arg6: memref<2x128xf32, #tpu.memory_space<vmem>>, %arg7: memref<2x128x56xbf16, #tpu.memory_space<vmem>>, %arg8: memref<1x56xf32, #tpu.memory_space<vmem>>, %arg9: memref<392x16xbf16, #tpu.memory_space<vmem>>, %arg10: memref<1x16xf32, #tpu.memory_space<vmem>>, %arg11: memref<8x392xbf16, #tpu.memory_space<vmem>>, %arg12: memref<1x392xf32, #tpu.memory_space<vmem>>, %arg13: memref<4x56x56xbf16, #tpu.memory_space<vmem>>, %arg14: memref<1x56xf32, #tpu.memory_space<vmem>>, %arg15: memref<4x56x32xbf16, #tpu.memory_space<vmem>>, %arg16: memref<1x32xf32, #tpu.memory_space<vmem>>, %arg17: memref<14x128xf32, #tpu.memory_space<vmem>>, %arg18: memref<2x16xf32, #tpu.memory_space<vmem>>) attributes {dimension_semantics = [#tpu.dimension_semantics<arbitrary>], iteration_bounds = array<i64: 1>, scalar_prefetch = 0 : i64, scratch_operands = 0 : i64, tpu.core_type = #tpu.core_type<tc>, window_params = [{pipeline_mode = #tpu.pipeline_mode<synchronous>, transform_indices = @transform_0, window_bounds = array<i64: 14, 60>}, {pipeline_mode = #tpu.pipeline_mode<synchronous>, transform_indices = @transform_1, window_bounds = array<i64: 14, 60>}, {pipeline_mode = #tpu.pipeline_mode<synchronous>, transform_indices = @transform_2, window_bounds = array<i64: 14, 60>}, {pipeline_mode = #tpu.pipeline_mode<synchronous>, transform_indices = @transform_3, window_bounds = array<i64: 2, 8>}, {pipeline_mode = #tpu.pipeline_mode<synchronous>, transform_indices = @transform_4, window_bounds = array<i64: 4, 60, 128>}, {pipeline_mode = #tpu.pipeline_mode<synchronous>, transform_indices = @transform_5, window_bounds = array<i64: 2, 128>}, {pipeline_mode = #tpu.pipeline_mode<synchronous>, transform_indices = @transform_6, window_bounds = array<i64: 2, 128, 56>}, {pipeline_mode = #tpu.pipeline_mode<synchronous>, transform_indices = @transform_7, window_bounds = array<i64: 1, 56>}, {pipeline_mode = #tpu.pipeline_mode<synchronous>, transform_indices = @transform_8, window_bounds = array<i64: 392, 16>}, {pipeline_mode = #tpu.pipeline_mode<synchronous>, transform_indices = @transform_9, window_bounds = array<i64: 1, 16>}, {pipeline_mode = #tpu.pipeline_mode<synchronous>, transform_indices = @transform_10, window_bounds = array<i64: 8, 392>}, {pipeline_mode = #tpu.pipeline_mode<synchronous>, transform_indices = @transform_11, window_bounds = array<i64: 1, 392>}, {pipeline_mode = #tpu.pipeline_mode<synchronous>, transform_indices = @transform_12, window_bounds = array<i64: 4, 56, 56>}, {pipeline_mode = #tpu.pipeline_mode<synchronous>, transform_indices = @transform_13, window_bounds = array<i64: 1, 56>}, {pipeline_mode = #tpu.pipeline_mode<synchronous>, transform_indices = @transform_14, window_bounds = array<i64: 4, 56, 32>}, {pipeline_mode = #tpu.pipeline_mode<synchronous>, transform_indices = @transform_15, window_bounds = array<i64: 1, 32>}, {pipeline_mode = #tpu.pipeline_mode<synchronous>, transform_indices = @transform_16, window_bounds = array<i64: 14, 128>}, {pipeline_mode = #tpu.pipeline_mode<synchronous>, transform_indices = @transform_17, window_bounds = array<i64: 2, 16>}]} {
    %c0 = arith.constant 0 : index
    %c0_0 = arith.constant 0 : index
    %0 = vector.load %arg1[%c0, %c0_0] : memref<14x60xbf16, #tpu.memory_space<vmem>>, vector<14x60xbf16>
    %c0_1 = arith.constant 0 : index
    %c0_2 = arith.constant 0 : index
    %c0_3 = arith.constant 0 : index
    %1 = vector.load %arg5[%c0_1, %c0_2, %c0_3] : memref<4x60x128xbf16, #tpu.memory_space<vmem>>, vector<1x60x128xbf16>
    %2 = vector.shape_cast %1 : vector<1x60x128xbf16> to vector<60x128xbf16>
    %cst = arith.constant dense<0.000000e+00> : vector<14x128xf32>
    %3 = tpu.matmul %0, %2, %cst {dimension_numbers = #tpu.dot_dimension_numbers<[1], [0], [0], [1], [0, 0, 1, 1], [], []>} : vector<14x60xbf16>, vector<60x128xbf16>, vector<14x128xf32> -> vector<14x128xf32>
    %c0_4 = arith.constant 0 : index
    %c0_5 = arith.constant 0 : index
    %4 = vector.load %arg2[%c0_4, %c0_5] : memref<14x60xbf16, #tpu.memory_space<vmem>>, vector<14x60xbf16>
    %c1 = arith.constant 1 : index
    %c0_6 = arith.constant 0 : index
    %c0_7 = arith.constant 0 : index
    %5 = vector.load %arg5[%c1, %c0_6, %c0_7] : memref<4x60x128xbf16, #tpu.memory_space<vmem>>, vector<1x60x128xbf16>
    %6 = vector.shape_cast %5 : vector<1x60x128xbf16> to vector<60x128xbf16>
    %cst_8 = arith.constant dense<0.000000e+00> : vector<14x128xf32>
    %7 = tpu.matmul %4, %6, %cst_8 {dimension_numbers = #tpu.dot_dimension_numbers<[1], [0], [0], [1], [0, 0, 1, 1], [], []>} : vector<14x60xbf16>, vector<60x128xbf16>, vector<14x128xf32> -> vector<14x128xf32>
    %8 = arith.addf %3, %7 : vector<14x128xf32>
    %c0_9 = arith.constant 0 : index
    %c0_10 = arith.constant 0 : index
    %9 = vector.load %arg6[%c0_9, %c0_10] : memref<2x128xf32, #tpu.memory_space<vmem>>, vector<1x128xf32>
    %10 = vector.broadcast %9 : vector<1x128xf32> to vector<14x128xf32>
    %11 = arith.addf %8, %10 : vector<14x128xf32>
    %cst_11 = arith.constant 0.000000e+00 : f32
    %12 = vector.broadcast %cst_11 : f32 to vector<14x128xf32>
    %13 = arith.maximumf %11, %12 : vector<14x128xf32>
    %c0_12 = arith.constant 0 : index
    %c0_13 = arith.constant 0 : index
    %14 = vector.load %arg2[%c0_12, %c0_13] : memref<14x60xbf16, #tpu.memory_space<vmem>>, vector<14x60xbf16>
    %c2 = arith.constant 2 : index
    %c0_14 = arith.constant 0 : index
    %c0_15 = arith.constant 0 : index
    %15 = vector.load %arg5[%c2, %c0_14, %c0_15] : memref<4x60x128xbf16, #tpu.memory_space<vmem>>, vector<1x60x128xbf16>
    %16 = vector.shape_cast %15 : vector<1x60x128xbf16> to vector<60x128xbf16>
    %cst_16 = arith.constant dense<0.000000e+00> : vector<14x128xf32>
    %17 = tpu.matmul %14, %16, %cst_16 {dimension_numbers = #tpu.dot_dimension_numbers<[1], [0], [0], [1], [0, 0, 1, 1], [], []>} : vector<14x60xbf16>, vector<60x128xbf16>, vector<14x128xf32> -> vector<14x128xf32>
    %c0_17 = arith.constant 0 : index
    %c0_18 = arith.constant 0 : index
    %18 = vector.load %arg3[%c0_17, %c0_18] : memref<14x60xbf16, #tpu.memory_space<vmem>>, vector<14x60xbf16>
    %c3 = arith.constant 3 : index
    %c0_19 = arith.constant 0 : index
    %c0_20 = arith.constant 0 : index
    %19 = vector.load %arg5[%c3, %c0_19, %c0_20] : memref<4x60x128xbf16, #tpu.memory_space<vmem>>, vector<1x60x128xbf16>
    %20 = vector.shape_cast %19 : vector<1x60x128xbf16> to vector<60x128xbf16>
    %cst_21 = arith.constant dense<0.000000e+00> : vector<14x128xf32>
    %21 = tpu.matmul %18, %20, %cst_21 {dimension_numbers = #tpu.dot_dimension_numbers<[1], [0], [0], [1], [0, 0, 1, 1], [], []>} : vector<14x60xbf16>, vector<60x128xbf16>, vector<14x128xf32> -> vector<14x128xf32>
    %22 = arith.addf %17, %21 : vector<14x128xf32>
    %c1_22 = arith.constant 1 : index
    %c0_23 = arith.constant 0 : index
    %23 = vector.load %arg6[%c1_22, %c0_23] : memref<2x128xf32, #tpu.memory_space<vmem>>, vector<1x128xf32>
    %24 = vector.broadcast %23 : vector<1x128xf32> to vector<14x128xf32>
    %25 = arith.addf %22, %24 : vector<14x128xf32>
    %cst_24 = arith.constant 0.000000e+00 : f32
    %26 = vector.broadcast %cst_24 : f32 to vector<14x128xf32>
    %27 = arith.maximumf %25, %26 : vector<14x128xf32>
    %cst_25 = arith.constant 0.000000e+00 : f32
    %28 = vector.broadcast %cst_25 : f32 to vector<1x128xf32>
    %29 = vector.extract_strided_slice %13 {offsets = [0, 0], sizes = [7, 128], strides = [1, 1]} : vector<14x128xf32> to vector<7x128xf32>
    %30 = tpu.concatenate %29, %28 in 0 : vector<7x128xf32>, vector<1x128xf32> -> vector<8x128xf32>
    %31 = vector.extract_strided_slice %27 {offsets = [0, 0], sizes = [7, 128], strides = [1, 1]} : vector<14x128xf32> to vector<7x128xf32>
    %32 = tpu.concatenate %28, %31 in 0 : vector<1x128xf32>, vector<7x128xf32> -> vector<8x128xf32>
    %33 = arith.addf %30, %32 : vector<8x128xf32>
    %34 = vector.extract_strided_slice %13 {offsets = [7, 0], sizes = [7, 128], strides = [1, 1]} : vector<14x128xf32> to vector<7x128xf32>
    %35 = tpu.concatenate %34, %28 in 0 : vector<7x128xf32>, vector<1x128xf32> -> vector<8x128xf32>
    %36 = vector.extract_strided_slice %27 {offsets = [7, 0], sizes = [7, 128], strides = [1, 1]} : vector<14x128xf32> to vector<7x128xf32>
    %37 = tpu.concatenate %28, %36 in 0 : vector<1x128xf32>, vector<7x128xf32> -> vector<8x128xf32>
    %38 = arith.addf %35, %37 : vector<8x128xf32>
    %39 = vector.extract_strided_slice %33 {offsets = [0, 0], sizes = [7, 128], strides = [1, 1]} : vector<8x128xf32> to vector<7x128xf32>
    %40 = vector.extract_strided_slice %38 {offsets = [0, 0], sizes = [7, 128], strides = [1, 1]} : vector<8x128xf32> to vector<7x128xf32>
    %41 = tpu.concatenate %39, %40 in 0 : vector<7x128xf32>, vector<7x128xf32> -> vector<14x128xf32>
    %42 = arith.truncf %41 : vector<14x128xf32> to vector<14x128xbf16>
    %43 = vector.extract_strided_slice %33 {offsets = [1, 0], sizes = [7, 128], strides = [1, 1]} : vector<8x128xf32> to vector<7x128xf32>
    %44 = vector.extract_strided_slice %38 {offsets = [1, 0], sizes = [7, 128], strides = [1, 1]} : vector<8x128xf32> to vector<7x128xf32>
    %45 = tpu.concatenate %43, %44 in 0 : vector<7x128xf32>, vector<7x128xf32> -> vector<14x128xf32>
    %46 = arith.truncf %45 : vector<14x128xf32> to vector<14x128xbf16>
    %c0_26 = arith.constant 0 : index
    %c0_27 = arith.constant 0 : index
    %c0_28 = arith.constant 0 : index
    %47 = vector.load %arg7[%c0_26, %c0_27, %c0_28] : memref<2x128x56xbf16, #tpu.memory_space<vmem>>, vector<1x128x56xbf16>
    %48 = vector.shape_cast %47 : vector<1x128x56xbf16> to vector<128x56xbf16>
    %cst_29 = arith.constant dense<0.000000e+00> : vector<14x56xf32>
    %49 = tpu.matmul %42, %48, %cst_29 {dimension_numbers = #tpu.dot_dimension_numbers<[1], [0], [0], [1], [0, 0, 1, 1], [], []>} : vector<14x128xbf16>, vector<128x56xbf16>, vector<14x56xf32> -> vector<14x56xf32>
    %c1_30 = arith.constant 1 : index
    %c0_31 = arith.constant 0 : index
    %c0_32 = arith.constant 0 : index
    %50 = vector.load %arg7[%c1_30, %c0_31, %c0_32] : memref<2x128x56xbf16, #tpu.memory_space<vmem>>, vector<1x128x56xbf16>
    %51 = vector.shape_cast %50 : vector<1x128x56xbf16> to vector<128x56xbf16>
    %cst_33 = arith.constant dense<0.000000e+00> : vector<14x56xf32>
    %52 = tpu.matmul %46, %51, %cst_33 {dimension_numbers = #tpu.dot_dimension_numbers<[1], [0], [0], [1], [0, 0, 1, 1], [], []>} : vector<14x128xbf16>, vector<128x56xbf16>, vector<14x56xf32> -> vector<14x56xf32>
    %53 = arith.addf %49, %52 : vector<14x56xf32>
    %c0_34 = arith.constant 0 : index
    %c0_35 = arith.constant 0 : index
    %54 = vector.load %arg8[%c0_34, %c0_35] : memref<1x56xf32, #tpu.memory_space<vmem>>, vector<1x56xf32>
    %55 = vector.broadcast %54 : vector<1x56xf32> to vector<14x56xf32>
    %56 = arith.addf %53, %55 : vector<14x56xf32>
    %cst_36 = arith.constant 0.000000e+00 : f32
    %57 = vector.broadcast %cst_36 : f32 to vector<14x56xf32>
    %58 = arith.maximumf %56, %57 : vector<14x56xf32>
    %59 = vector.extract_strided_slice %58 {offsets = [0, 0], sizes = [1, 56], strides = [1, 1]} : vector<14x56xf32> to vector<1x56xf32>
    %60 = vector.extract_strided_slice %58 {offsets = [1, 0], sizes = [1, 56], strides = [1, 1]} : vector<14x56xf32> to vector<1x56xf32>
    %61 = vector.extract_strided_slice %58 {offsets = [2, 0], sizes = [1, 56], strides = [1, 1]} : vector<14x56xf32> to vector<1x56xf32>
    %62 = vector.extract_strided_slice %58 {offsets = [3, 0], sizes = [1, 56], strides = [1, 1]} : vector<14x56xf32> to vector<1x56xf32>
    %63 = vector.extract_strided_slice %58 {offsets = [4, 0], sizes = [1, 56], strides = [1, 1]} : vector<14x56xf32> to vector<1x56xf32>
    %64 = vector.extract_strided_slice %58 {offsets = [5, 0], sizes = [1, 56], strides = [1, 1]} : vector<14x56xf32> to vector<1x56xf32>
    %65 = vector.extract_strided_slice %58 {offsets = [6, 0], sizes = [1, 56], strides = [1, 1]} : vector<14x56xf32> to vector<1x56xf32>
    %66 = tpu.concatenate %59, %60, %61, %62, %63, %64, %65 in 1 : vector<1x56xf32>, vector<1x56xf32>, vector<1x56xf32>, vector<1x56xf32>, vector<1x56xf32>, vector<1x56xf32>, vector<1x56xf32> -> vector<1x392xf32>
    %67 = vector.extract_strided_slice %58 {offsets = [7, 0], sizes = [1, 56], strides = [1, 1]} : vector<14x56xf32> to vector<1x56xf32>
    %68 = vector.extract_strided_slice %58 {offsets = [8, 0], sizes = [1, 56], strides = [1, 1]} : vector<14x56xf32> to vector<1x56xf32>
    %69 = vector.extract_strided_slice %58 {offsets = [9, 0], sizes = [1, 56], strides = [1, 1]} : vector<14x56xf32> to vector<1x56xf32>
    %70 = vector.extract_strided_slice %58 {offsets = [10, 0], sizes = [1, 56], strides = [1, 1]} : vector<14x56xf32> to vector<1x56xf32>
    %71 = vector.extract_strided_slice %58 {offsets = [11, 0], sizes = [1, 56], strides = [1, 1]} : vector<14x56xf32> to vector<1x56xf32>
    %72 = vector.extract_strided_slice %58 {offsets = [12, 0], sizes = [1, 56], strides = [1, 1]} : vector<14x56xf32> to vector<1x56xf32>
    %73 = vector.extract_strided_slice %58 {offsets = [13, 0], sizes = [1, 56], strides = [1, 1]} : vector<14x56xf32> to vector<1x56xf32>
    %74 = tpu.concatenate %67, %68, %69, %70, %71, %72, %73 in 1 : vector<1x56xf32>, vector<1x56xf32>, vector<1x56xf32>, vector<1x56xf32>, vector<1x56xf32>, vector<1x56xf32>, vector<1x56xf32> -> vector<1x392xf32>
    %75 = tpu.concatenate %66, %74 in 0 : vector<1x392xf32>, vector<1x392xf32> -> vector<2x392xf32>
    %76 = arith.truncf %75 : vector<2x392xf32> to vector<2x392xbf16>
    %c0_37 = arith.constant 0 : index
    %c0_38 = arith.constant 0 : index
    %77 = vector.load %arg9[%c0_37, %c0_38] : memref<392x16xbf16, #tpu.memory_space<vmem>>, vector<392x16xbf16>
    %cst_39 = arith.constant dense<0.000000e+00> : vector<2x16xf32>
    %78 = tpu.matmul %76, %77, %cst_39 {dimension_numbers = #tpu.dot_dimension_numbers<[1], [0], [0], [1], [0, 0, 1, 1], [], []>} : vector<2x392xbf16>, vector<392x16xbf16>, vector<2x16xf32> -> vector<2x16xf32>
    %c0_40 = arith.constant 0 : index
    %c0_41 = arith.constant 0 : index
    %79 = vector.load %arg10[%c0_40, %c0_41] : memref<1x16xf32, #tpu.memory_space<vmem>>, vector<1x16xf32>
    %80 = vector.broadcast %79 : vector<1x16xf32> to vector<2x16xf32>
    %81 = arith.addf %78, %80 : vector<2x16xf32>
    %82 = vector.extract_strided_slice %81 {offsets = [0, 0], sizes = [2, 8], strides = [1, 1]} : vector<2x16xf32> to vector<2x8xf32>
    %83 = vector.extract_strided_slice %81 {offsets = [0, 8], sizes = [2, 8], strides = [1, 1]} : vector<2x16xf32> to vector<2x8xf32>
    %c0_42 = arith.constant 0 : index
    %c0_43 = arith.constant 0 : index
    %84 = vector.load %arg4[%c0_42, %c0_43] : memref<2x8xf32, #tpu.memory_space<vmem>>, vector<2x8xf32>
    %cst_44 = arith.constant 5.000000e-01 : f32
    %85 = vector.broadcast %cst_44 : f32 to vector<2x8xf32>
    %86 = arith.mulf %85, %83 : vector<2x8xf32>
    %87 = math.exp %86 : vector<2x8xf32>
    %88 = arith.mulf %84, %87 : vector<2x8xf32>
    %89 = arith.addf %82, %88 : vector<2x8xf32>
    %c0_45 = arith.constant 0 : index
    %c0_46 = arith.constant 0 : index
    %90 = vector.load %arg18[%c0_45, %c0_46] : memref<2x16xf32, #tpu.memory_space<vmem>>, vector<2x16xf32>
    tpu.vector_store %arg18[%c0_45, %c0_46], %81 {strides = array<i32>} : memref<2x16xf32, #tpu.memory_space<vmem>>, vector<2x16xf32>,
    %91 = arith.truncf %89 : vector<2x8xf32> to vector<2x8xbf16>
    %c0_47 = arith.constant 0 : index
    %c0_48 = arith.constant 0 : index
    %92 = vector.load %arg11[%c0_47, %c0_48] : memref<8x392xbf16, #tpu.memory_space<vmem>>, vector<8x392xbf16>
    %cst_49 = arith.constant dense<0.000000e+00> : vector<2x392xf32>
    %93 = tpu.matmul %91, %92, %cst_49 {dimension_numbers = #tpu.dot_dimension_numbers<[1], [0], [0], [1], [0, 0, 1, 1], [], []>} : vector<2x8xbf16>, vector<8x392xbf16>, vector<2x392xf32> -> vector<2x392xf32>
    %c0_50 = arith.constant 0 : index
    %c0_51 = arith.constant 0 : index
    %94 = vector.load %arg12[%c0_50, %c0_51] : memref<1x392xf32, #tpu.memory_space<vmem>>, vector<1x392xf32>
    %95 = vector.broadcast %94 : vector<1x392xf32> to vector<2x392xf32>
    %96 = arith.addf %93, %95 : vector<2x392xf32>
    %cst_52 = arith.constant 0.000000e+00 : f32
    %97 = vector.broadcast %cst_52 : f32 to vector<1x56xf32>
    %98 = vector.extract_strided_slice %96 {offsets = [0, 0], sizes = [1, 56], strides = [1, 1]} : vector<2x392xf32> to vector<1x56xf32>
    %99 = vector.extract_strided_slice %96 {offsets = [0, 56], sizes = [1, 56], strides = [1, 1]} : vector<2x392xf32> to vector<1x56xf32>
    %100 = vector.extract_strided_slice %96 {offsets = [0, 112], sizes = [1, 56], strides = [1, 1]} : vector<2x392xf32> to vector<1x56xf32>
    %101 = vector.extract_strided_slice %96 {offsets = [0, 168], sizes = [1, 56], strides = [1, 1]} : vector<2x392xf32> to vector<1x56xf32>
    %102 = vector.extract_strided_slice %96 {offsets = [0, 224], sizes = [1, 56], strides = [1, 1]} : vector<2x392xf32> to vector<1x56xf32>
    %103 = vector.extract_strided_slice %96 {offsets = [0, 280], sizes = [1, 56], strides = [1, 1]} : vector<2x392xf32> to vector<1x56xf32>
    %104 = vector.extract_strided_slice %96 {offsets = [0, 336], sizes = [1, 56], strides = [1, 1]} : vector<2x392xf32> to vector<1x56xf32>
    %105 = tpu.concatenate %97, %98, %99, %100, %101, %102, %103, %104, %97 in 0 : vector<1x56xf32>, vector<1x56xf32>, vector<1x56xf32>, vector<1x56xf32>, vector<1x56xf32>, vector<1x56xf32>, vector<1x56xf32>, vector<1x56xf32>, vector<1x56xf32> -> vector<9x56xf32>
    %106 = vector.extract_strided_slice %96 {offsets = [1, 0], sizes = [1, 56], strides = [1, 1]} : vector<2x392xf32> to vector<1x56xf32>
    %107 = vector.extract_strided_slice %96 {offsets = [1, 56], sizes = [1, 56], strides = [1, 1]} : vector<2x392xf32> to vector<1x56xf32>
    %108 = vector.extract_strided_slice %96 {offsets = [1, 112], sizes = [1, 56], strides = [1, 1]} : vector<2x392xf32> to vector<1x56xf32>
    %109 = vector.extract_strided_slice %96 {offsets = [1, 168], sizes = [1, 56], strides = [1, 1]} : vector<2x392xf32> to vector<1x56xf32>
    %110 = vector.extract_strided_slice %96 {offsets = [1, 224], sizes = [1, 56], strides = [1, 1]} : vector<2x392xf32> to vector<1x56xf32>
    %111 = vector.extract_strided_slice %96 {offsets = [1, 280], sizes = [1, 56], strides = [1, 1]} : vector<2x392xf32> to vector<1x56xf32>
    %112 = vector.extract_strided_slice %96 {offsets = [1, 336], sizes = [1, 56], strides = [1, 1]} : vector<2x392xf32> to vector<1x56xf32>
    %113 = tpu.concatenate %97, %106, %107, %108, %109, %110, %111, %112, %97 in 0 : vector<1x56xf32>, vector<1x56xf32>, vector<1x56xf32>, vector<1x56xf32>, vector<1x56xf32>, vector<1x56xf32>, vector<1x56xf32>, vector<1x56xf32>, vector<1x56xf32> -> vector<9x56xf32>
    %114 = vector.extract_strided_slice %105 {offsets = [0, 0], sizes = [7, 56], strides = [1, 1]} : vector<9x56xf32> to vector<7x56xf32>
    %115 = vector.extract_strided_slice %113 {offsets = [0, 0], sizes = [7, 56], strides = [1, 1]} : vector<9x56xf32> to vector<7x56xf32>
    %116 = tpu.concatenate %114, %115 in 0 : vector<7x56xf32>, vector<7x56xf32> -> vector<14x56xf32>
    %117 = arith.truncf %116 : vector<14x56xf32> to vector<14x56xbf16>
    %118 = vector.extract_strided_slice %105 {offsets = [1, 0], sizes = [7, 56], strides = [1, 1]} : vector<9x56xf32> to vector<7x56xf32>
    %119 = vector.extract_strided_slice %113 {offsets = [1, 0], sizes = [7, 56], strides = [1, 1]} : vector<9x56xf32> to vector<7x56xf32>
    %120 = tpu.concatenate %118, %119 in 0 : vector<7x56xf32>, vector<7x56xf32> -> vector<14x56xf32>
    %121 = arith.truncf %120 : vector<14x56xf32> to vector<14x56xbf16>
    %122 = vector.extract_strided_slice %105 {offsets = [2, 0], sizes = [7, 56], strides = [1, 1]} : vector<9x56xf32> to vector<7x56xf32>
    %123 = vector.extract_strided_slice %113 {offsets = [2, 0], sizes = [7, 56], strides = [1, 1]} : vector<9x56xf32> to vector<7x56xf32>
    %124 = tpu.concatenate %122, %123 in 0 : vector<7x56xf32>, vector<7x56xf32> -> vector<14x56xf32>
    %125 = arith.truncf %124 : vector<14x56xf32> to vector<14x56xbf16>
    %c3_53 = arith.constant 3 : index
    %c0_54 = arith.constant 0 : index
    %c0_55 = arith.constant 0 : index
    %126 = vector.load %arg13[%c3_53, %c0_54, %c0_55] : memref<4x56x56xbf16, #tpu.memory_space<vmem>>, vector<1x56x56xbf16>
    %127 = vector.shape_cast %126 : vector<1x56x56xbf16> to vector<56x56xbf16>
    %cst_56 = arith.constant dense<0.000000e+00> : vector<14x56xf32>
    %128 = tpu.matmul %117, %127, %cst_56 {dimension_numbers = #tpu.dot_dimension_numbers<[1], [0], [0], [1], [0, 0, 1, 1], [], []>} : vector<14x56xbf16>, vector<56x56xbf16>, vector<14x56xf32> -> vector<14x56xf32>
    %c1_57 = arith.constant 1 : index
    %c0_58 = arith.constant 0 : index
    %c0_59 = arith.constant 0 : index
    %129 = vector.load %arg13[%c1_57, %c0_58, %c0_59] : memref<4x56x56xbf16, #tpu.memory_space<vmem>>, vector<1x56x56xbf16>
    %130 = vector.shape_cast %129 : vector<1x56x56xbf16> to vector<56x56xbf16>
    %cst_60 = arith.constant dense<0.000000e+00> : vector<14x56xf32>
    %131 = tpu.matmul %121, %130, %cst_60 {dimension_numbers = #tpu.dot_dimension_numbers<[1], [0], [0], [1], [0, 0, 1, 1], [], []>} : vector<14x56xbf16>, vector<56x56xbf16>, vector<14x56xf32> -> vector<14x56xf32>
    %132 = arith.addf %128, %131 : vector<14x56xf32>
    %c0_61 = arith.constant 0 : index
    %c0_62 = arith.constant 0 : index
    %133 = vector.load %arg14[%c0_61, %c0_62] : memref<1x56xf32, #tpu.memory_space<vmem>>, vector<1x56xf32>
    %134 = vector.broadcast %133 : vector<1x56xf32> to vector<14x56xf32>
    %135 = arith.addf %132, %134 : vector<14x56xf32>
    %cst_63 = arith.constant 0.000000e+00 : f32
    %136 = vector.broadcast %cst_63 : f32 to vector<14x56xf32>
    %137 = arith.maximumf %135, %136 : vector<14x56xf32>
    %c2_64 = arith.constant 2 : index
    %c0_65 = arith.constant 0 : index
    %c0_66 = arith.constant 0 : index
    %138 = vector.load %arg13[%c2_64, %c0_65, %c0_66] : memref<4x56x56xbf16, #tpu.memory_space<vmem>>, vector<1x56x56xbf16>
    %139 = vector.shape_cast %138 : vector<1x56x56xbf16> to vector<56x56xbf16>
    %cst_67 = arith.constant dense<0.000000e+00> : vector<14x56xf32>
    %140 = tpu.matmul %121, %139, %cst_67 {dimension_numbers = #tpu.dot_dimension_numbers<[1], [0], [0], [1], [0, 0, 1, 1], [], []>} : vector<14x56xbf16>, vector<56x56xbf16>, vector<14x56xf32> -> vector<14x56xf32>
    %c0_68 = arith.constant 0 : index
    %c0_69 = arith.constant 0 : index
    %c0_70 = arith.constant 0 : index
    %141 = vector.load %arg13[%c0_68, %c0_69, %c0_70] : memref<4x56x56xbf16, #tpu.memory_space<vmem>>, vector<1x56x56xbf16>
    %142 = vector.shape_cast %141 : vector<1x56x56xbf16> to vector<56x56xbf16>
    %cst_71 = arith.constant dense<0.000000e+00> : vector<14x56xf32>
    %143 = tpu.matmul %125, %142, %cst_71 {dimension_numbers = #tpu.dot_dimension_numbers<[1], [0], [0], [1], [0, 0, 1, 1], [], []>} : vector<14x56xbf16>, vector<56x56xbf16>, vector<14x56xf32> -> vector<14x56xf32>
    %144 = arith.addf %140, %143 : vector<14x56xf32>
    %c0_72 = arith.constant 0 : index
    %c0_73 = arith.constant 0 : index
    %145 = vector.load %arg14[%c0_72, %c0_73] : memref<1x56xf32, #tpu.memory_space<vmem>>, vector<1x56xf32>
    %146 = vector.broadcast %145 : vector<1x56xf32> to vector<14x56xf32>
    %147 = arith.addf %144, %146 : vector<14x56xf32>
    %cst_74 = arith.constant 0.000000e+00 : f32
    %148 = vector.broadcast %cst_74 : f32 to vector<14x56xf32>
    %149 = arith.maximumf %147, %148 : vector<14x56xf32>
    %150 = vector.extract_strided_slice %149 {offsets = [0, 0], sizes = [6, 56], strides = [1, 1]} : vector<14x56xf32> to vector<6x56xf32>
    %151 = tpu.concatenate %97, %150 in 0 : vector<1x56xf32>, vector<6x56xf32> -> vector<7x56xf32>
    %152 = vector.extract_strided_slice %149 {offsets = [7, 0], sizes = [6, 56], strides = [1, 1]} : vector<14x56xf32> to vector<6x56xf32>
    %153 = tpu.concatenate %97, %152 in 0 : vector<1x56xf32>, vector<6x56xf32> -> vector<7x56xf32>
    %154 = tpu.concatenate %151, %153 in 0 : vector<7x56xf32>, vector<7x56xf32> -> vector<14x56xf32>
    %155 = arith.truncf %154 : vector<14x56xf32> to vector<14x56xbf16>
    %156 = vector.extract_strided_slice %137 {offsets = [1, 0], sizes = [6, 56], strides = [1, 1]} : vector<14x56xf32> to vector<6x56xf32>
    %157 = tpu.concatenate %156, %97 in 0 : vector<6x56xf32>, vector<1x56xf32> -> vector<7x56xf32>
    %158 = vector.extract_strided_slice %137 {offsets = [8, 0], sizes = [6, 56], strides = [1, 1]} : vector<14x56xf32> to vector<6x56xf32>
    %159 = tpu.concatenate %158, %97 in 0 : vector<6x56xf32>, vector<1x56xf32> -> vector<7x56xf32>
    %160 = tpu.concatenate %157, %159 in 0 : vector<7x56xf32>, vector<7x56xf32> -> vector<14x56xf32>
    %161 = arith.truncf %160 : vector<14x56xf32> to vector<14x56xbf16>
    %162 = arith.truncf %137 : vector<14x56xf32> to vector<14x56xbf16>
    %163 = arith.truncf %149 : vector<14x56xf32> to vector<14x56xbf16>
    %c3_75 = arith.constant 3 : index
    %c0_76 = arith.constant 0 : index
    %c0_77 = arith.constant 0 : index
    %164 = vector.load %arg15[%c3_75, %c0_76, %c0_77] : memref<4x56x32xbf16, #tpu.memory_space<vmem>>, vector<1x56x32xbf16>
    %165 = vector.shape_cast %164 : vector<1x56x32xbf16> to vector<56x32xbf16>
    %cst_78 = arith.constant dense<0.000000e+00> : vector<14x32xf32>
    %166 = tpu.matmul %155, %165, %cst_78 {dimension_numbers = #tpu.dot_dimension_numbers<[1], [0], [0], [1], [0, 0, 1, 1], [], []>} : vector<14x56xbf16>, vector<56x32xbf16>, vector<14x32xf32> -> vector<14x32xf32>
    %c1_79 = arith.constant 1 : index
    %c0_80 = arith.constant 0 : index
    %c0_81 = arith.constant 0 : index
    %167 = vector.load %arg15[%c1_79, %c0_80, %c0_81] : memref<4x56x32xbf16, #tpu.memory_space<vmem>>, vector<1x56x32xbf16>
    %168 = vector.shape_cast %167 : vector<1x56x32xbf16> to vector<56x32xbf16>
    %cst_82 = arith.constant dense<0.000000e+00> : vector<14x32xf32>
    %169 = tpu.matmul %162, %168, %cst_82 {dimension_numbers = #tpu.dot_dimension_numbers<[1], [0], [0], [1], [0, 0, 1, 1], [], []>} : vector<14x56xbf16>, vector<56x32xbf16>, vector<14x32xf32> -> vector<14x32xf32>
    %170 = arith.addf %166, %169 : vector<14x32xf32>
    %c2_83 = arith.constant 2 : index
    %c0_84 = arith.constant 0 : index
    %c0_85 = arith.constant 0 : index
    %171 = vector.load %arg15[%c2_83, %c0_84, %c0_85] : memref<4x56x32xbf16, #tpu.memory_space<vmem>>, vector<1x56x32xbf16>
    %172 = vector.shape_cast %171 : vector<1x56x32xbf16> to vector<56x32xbf16>
    %cst_86 = arith.constant dense<0.000000e+00> : vector<14x32xf32>
    %173 = tpu.matmul %162, %172, %cst_86 {dimension_numbers = #tpu.dot_dimension_numbers<[1], [0], [0], [1], [0, 0, 1, 1], [], []>} : vector<14x56xbf16>, vector<56x32xbf16>, vector<14x32xf32> -> vector<14x32xf32>
    %c0_87 = arith.constant 0 : index
    %c0_88 = arith.constant 0 : index
    %c0_89 = arith.constant 0 : index
    %174 = vector.load %arg15[%c0_87, %c0_88, %c0_89] : memref<4x56x32xbf16, #tpu.memory_space<vmem>>, vector<1x56x32xbf16>
    %175 = vector.shape_cast %174 : vector<1x56x32xbf16> to vector<56x32xbf16>
    %cst_90 = arith.constant dense<0.000000e+00> : vector<14x32xf32>
    %176 = tpu.matmul %163, %175, %cst_90 {dimension_numbers = #tpu.dot_dimension_numbers<[1], [0], [0], [1], [0, 0, 1, 1], [], []>} : vector<14x56xbf16>, vector<56x32xbf16>, vector<14x32xf32> -> vector<14x32xf32>
    %177 = arith.addf %173, %176 : vector<14x32xf32>
    %c3_91 = arith.constant 3 : index
    %c0_92 = arith.constant 0 : index
    %c0_93 = arith.constant 0 : index
    %178 = vector.load %arg15[%c3_91, %c0_92, %c0_93] : memref<4x56x32xbf16, #tpu.memory_space<vmem>>, vector<1x56x32xbf16>
    %179 = vector.shape_cast %178 : vector<1x56x32xbf16> to vector<56x32xbf16>
    %cst_94 = arith.constant dense<0.000000e+00> : vector<14x32xf32>
    %180 = tpu.matmul %162, %179, %cst_94 {dimension_numbers = #tpu.dot_dimension_numbers<[1], [0], [0], [1], [0, 0, 1, 1], [], []>} : vector<14x56xbf16>, vector<56x32xbf16>, vector<14x32xf32> -> vector<14x32xf32>
    %c1_95 = arith.constant 1 : index
    %c0_96 = arith.constant 0 : index
    %c0_97 = arith.constant 0 : index
    %181 = vector.load %arg15[%c1_95, %c0_96, %c0_97] : memref<4x56x32xbf16, #tpu.memory_space<vmem>>, vector<1x56x32xbf16>
    %182 = vector.shape_cast %181 : vector<1x56x32xbf16> to vector<56x32xbf16>
    %cst_98 = arith.constant dense<0.000000e+00> : vector<14x32xf32>
    %183 = tpu.matmul %163, %182, %cst_98 {dimension_numbers = #tpu.dot_dimension_numbers<[1], [0], [0], [1], [0, 0, 1, 1], [], []>} : vector<14x56xbf16>, vector<56x32xbf16>, vector<14x32xf32> -> vector<14x32xf32>
    %184 = arith.addf %180, %183 : vector<14x32xf32>
    %c2_99 = arith.constant 2 : index
    %c0_100 = arith.constant 0 : index
    %c0_101 = arith.constant 0 : index
    %185 = vector.load %arg15[%c2_99, %c0_100, %c0_101] : memref<4x56x32xbf16, #tpu.memory_space<vmem>>, vector<1x56x32xbf16>
    %186 = vector.shape_cast %185 : vector<1x56x32xbf16> to vector<56x32xbf16>
    %cst_102 = arith.constant dense<0.000000e+00> : vector<14x32xf32>
    %187 = tpu.matmul %163, %186, %cst_102 {dimension_numbers = #tpu.dot_dimension_numbers<[1], [0], [0], [1], [0, 0, 1, 1], [], []>} : vector<14x56xbf16>, vector<56x32xbf16>, vector<14x32xf32> -> vector<14x32xf32>
    %c0_103 = arith.constant 0 : index
    %c0_104 = arith.constant 0 : index
    %c0_105 = arith.constant 0 : index
    %188 = vector.load %arg15[%c0_103, %c0_104, %c0_105] : memref<4x56x32xbf16, #tpu.memory_space<vmem>>, vector<1x56x32xbf16>
    %189 = vector.shape_cast %188 : vector<1x56x32xbf16> to vector<56x32xbf16>
    %cst_106 = arith.constant dense<0.000000e+00> : vector<14x32xf32>
    %190 = tpu.matmul %161, %189, %cst_106 {dimension_numbers = #tpu.dot_dimension_numbers<[1], [0], [0], [1], [0, 0, 1, 1], [], []>} : vector<14x56xbf16>, vector<56x32xbf16>, vector<14x32xf32> -> vector<14x32xf32>
    %191 = arith.addf %187, %190 : vector<14x32xf32>
    %c0_107 = arith.constant 0 : index
    %c0_108 = arith.constant 0 : index
    %192 = vector.load %arg16[%c0_107, %c0_108] : memref<1x32xf32, #tpu.memory_space<vmem>>, vector<1x32xf32>
    %193 = vector.broadcast %192 : vector<1x32xf32> to vector<14x32xf32>
    %194 = arith.addf %170, %193 : vector<14x32xf32>
    %195 = vector.broadcast %192 : vector<1x32xf32> to vector<14x32xf32>
    %196 = arith.addf %177, %195 : vector<14x32xf32>
    %197 = vector.broadcast %192 : vector<1x32xf32> to vector<14x32xf32>
    %198 = arith.addf %184, %197 : vector<14x32xf32>
    %199 = vector.broadcast %192 : vector<1x32xf32> to vector<14x32xf32>
    %200 = arith.addf %191, %199 : vector<14x32xf32>
    %201 = tpu.concatenate %194, %196, %198, %200 in 1 : vector<14x32xf32>, vector<14x32xf32>, vector<14x32xf32>, vector<14x32xf32> -> vector<14x128xf32>
    %202 = arith.negf %201 : vector<14x128xf32>
    %203 = math.exp %202 : vector<14x128xf32>
    %cst_109 = arith.constant 1.000000e+00 : f32
    %204 = vector.broadcast %cst_109 : f32 to vector<14x128xf32>
    %205 = arith.addf %204, %203 : vector<14x128xf32>
    %206 = arith.divf %204, %205 : vector<14x128xf32>
    %c0_110 = arith.constant 0 : index
    %c0_111 = arith.constant 0 : index
    %207 = vector.load %arg17[%c0_110, %c0_111] : memref<14x128xf32, #tpu.memory_space<vmem>>, vector<14x128xf32>
    tpu.vector_store %arg17[%c0_110, %c0_111], %206 {strides = array<i32>} : memref<14x128xf32, #tpu.memory_space<vmem>>, vector<14x128xf32>,
    return
  }
  func.func @transform_0(%arg0: i32) -> (i32, i32) {
    %c0_i32 = arith.constant 0 : i32
    %c0_i32_0 = arith.constant 0 : i32
    %c0_i32_1 = arith.constant 0 : i32
    return %c0_i32, %c0_i32_0 : i32, i32
  }
  func.func @transform_1(%arg0: i32) -> (i32, i32) {
    %c0_i32 = arith.constant 0 : i32
    %c0_i32_0 = arith.constant 0 : i32
    %c0_i32_1 = arith.constant 0 : i32
    return %c0_i32, %c0_i32_0 : i32, i32
  }
  func.func @transform_2(%arg0: i32) -> (i32, i32) {
    %c0_i32 = arith.constant 0 : i32
    %c0_i32_0 = arith.constant 0 : i32
    %c0_i32_1 = arith.constant 0 : i32
    return %c0_i32, %c0_i32_0 : i32, i32
  }
  func.func @transform_3(%arg0: i32) -> (i32, i32) {
    %c0_i32 = arith.constant 0 : i32
    %c0_i32_0 = arith.constant 0 : i32
    %c0_i32_1 = arith.constant 0 : i32
    return %c0_i32, %c0_i32_0 : i32, i32
  }
  func.func @transform_4(%arg0: i32) -> (i32, i32, i32) {
    %c0_i32 = arith.constant 0 : i32
    %c0_i32_0 = arith.constant 0 : i32
    %c0_i32_1 = arith.constant 0 : i32
    %c0_i32_2 = arith.constant 0 : i32
    return %c0_i32, %c0_i32_0, %c0_i32_1 : i32, i32, i32
  }
  func.func @transform_5(%arg0: i32) -> (i32, i32) {
    %c0_i32 = arith.constant 0 : i32
    %c0_i32_0 = arith.constant 0 : i32
    %c0_i32_1 = arith.constant 0 : i32
    return %c0_i32, %c0_i32_0 : i32, i32
  }
  func.func @transform_6(%arg0: i32) -> (i32, i32, i32) {
    %c0_i32 = arith.constant 0 : i32
    %c0_i32_0 = arith.constant 0 : i32
    %c0_i32_1 = arith.constant 0 : i32
    %c0_i32_2 = arith.constant 0 : i32
    return %c0_i32, %c0_i32_0, %c0_i32_1 : i32, i32, i32
  }
  func.func @transform_7(%arg0: i32) -> (i32, i32) {
    %c0_i32 = arith.constant 0 : i32
    %c0_i32_0 = arith.constant 0 : i32
    %c0_i32_1 = arith.constant 0 : i32
    return %c0_i32, %c0_i32_0 : i32, i32
  }
  func.func @transform_8(%arg0: i32) -> (i32, i32) {
    %c0_i32 = arith.constant 0 : i32
    %c0_i32_0 = arith.constant 0 : i32
    %c0_i32_1 = arith.constant 0 : i32
    return %c0_i32, %c0_i32_0 : i32, i32
  }
  func.func @transform_9(%arg0: i32) -> (i32, i32) {
    %c0_i32 = arith.constant 0 : i32
    %c0_i32_0 = arith.constant 0 : i32
    %c0_i32_1 = arith.constant 0 : i32
    return %c0_i32, %c0_i32_0 : i32, i32
  }
  func.func @transform_10(%arg0: i32) -> (i32, i32) {
    %c0_i32 = arith.constant 0 : i32
    %c0_i32_0 = arith.constant 0 : i32
    %c0_i32_1 = arith.constant 0 : i32
    return %c0_i32, %c0_i32_0 : i32, i32
  }
  func.func @transform_11(%arg0: i32) -> (i32, i32) {
    %c0_i32 = arith.constant 0 : i32
    %c0_i32_0 = arith.constant 0 : i32
    %c0_i32_1 = arith.constant 0 : i32
    return %c0_i32, %c0_i32_0 : i32, i32
  }
  func.func @transform_12(%arg0: i32) -> (i32, i32, i32) {
    %c0_i32 = arith.constant 0 : i32
    %c0_i32_0 = arith.constant 0 : i32
    %c0_i32_1 = arith.constant 0 : i32
    %c0_i32_2 = arith.constant 0 : i32
    return %c0_i32, %c0_i32_0, %c0_i32_1 : i32, i32, i32
  }
  func.func @transform_13(%arg0: i32) -> (i32, i32) {
    %c0_i32 = arith.constant 0 : i32
    %c0_i32_0 = arith.constant 0 : i32
    %c0_i32_1 = arith.constant 0 : i32
    return %c0_i32, %c0_i32_0 : i32, i32
  }
  func.func @transform_14(%arg0: i32) -> (i32, i32, i32) {
    %c0_i32 = arith.constant 0 : i32
    %c0_i32_0 = arith.constant 0 : i32
    %c0_i32_1 = arith.constant 0 : i32
    %c0_i32_2 = arith.constant 0 : i32
    return %c0_i32, %c0_i32_0, %c0_i32_1 : i32, i32, i32
  }
  func.func @transform_15(%arg0: i32) -> (i32, i32) {
    %c0_i32 = arith.constant 0 : i32
    %c0_i32_0 = arith.constant 0 : i32
    %c0_i32_1 = arith.constant 0 : i32
    return %c0_i32, %c0_i32_0 : i32, i32
  }
  func.func @transform_16(%arg0: i32) -> (i32, i32) {
    %c0_i32 = arith.constant 0 : i32
    %c0_i32_0 = arith.constant 0 : i32
    %c0_i32_1 = arith.constant 0 : i32
    return %c0_i32, %c0_i32_0 : i32, i32
  }
  func.func @transform_17(%arg0: i32) -> (i32, i32) {
    %c0_i32 = arith.constant 0 : i32
    %c0_i32_0 = arith.constant 0 : i32
    %c0_i32_1 = arith.constant 0 : i32
    return %c0_i32, %c0_i32_0 : i32, i32
  }
}

</mosaic_0001>

<llo_original>
// kernel: vae_forward.1
$region0: #{vae_forward.1}
  #allocation0 [shape = 'u32[]', space=smem, size = 0x4, offset = 0x4, fixed_abs, tag = 'smem constant byte address 0x4 - core index']
  #allocation1 [shape = 'u32[144,128]{1,0:T(1,128)}', space=vmem, size = 0x12000, scoped, tag = 'internal scratch']
  %s0 = inlined_call_operand.vmem [shape: bf16[14,60], index: 0, kind: input, shape index: {}]
  %s1 = inlined_call_operand.vmem [shape: bf16[14,60], index: 1, kind: input, shape index: {}]
  %s2 = inlined_call_operand.vmem [shape: bf16[14,60], index: 2, kind: input, shape index: {}]
  %s3 = inlined_call_operand.vmem [shape: f32[2,8], index: 3, kind: input, shape index: {}]
  %s4 = inlined_call_operand.vmem [shape: bf16[4,60,128], index: 4, kind: input, shape index: {}]
  %s5 = inlined_call_operand.vmem [shape: f32[2,128], index: 5, kind: input, shape index: {}]
  %s6 = inlined_call_operand.vmem [shape: bf16[2,128,56], index: 6, kind: input, shape index: {}]
  %s7 = inlined_call_operand.vmem [shape: f32[1,56], index: 7, kind: input, shape index: {}]
  %s8 = inlined_call_operand.vmem [shape: bf16[392,16], index: 8, kind: input, shape index: {}]
  %s9 = inlined_call_operand.vmem [shape: f32[1,16], index: 9, kind: input, shape index: {}]
  %s10 = inlined_call_operand.vmem [shape: bf16[8,392], index: 10, kind: input, shape index: {}]
  %s11 = inlined_call_operand.vmem [shape: f32[1,392], index: 11, kind: input, shape index: {}]
  %s12 = inlined_call_operand.vmem [shape: bf16[4,56,56], index: 12, kind: input, shape index: {}]
  %s13 = inlined_call_operand.vmem [shape: f32[1,56], index: 13, kind: input, shape index: {}]
  %s14 = inlined_call_operand.vmem [shape: bf16[4,56,32], index: 14, kind: input, shape index: {}]
  %s15 = inlined_call_operand.vmem [shape: f32[1,32], index: 15, kind: input, shape index: {}]
  %s16 = inlined_call_operand.vmem [shape: f32[14,128], index: 16, kind: output, shape index: {0}]
  %s17 = inlined_call_operand.vmem [shape: f32[2,16], index: 17, kind: output, shape index: {1}]
  %18 = xla_tuple %s16, %s17
  %s19 = sld [smem:[#allocation0]]
  $region82: #{vae_forward.1} parent=0
    _
  %s21 = ssub.s32 1, %s19
  %s22 = scalar_select 0, %s21, %s19
  // Predicated region
  $region2: #{vae_forward.1} parent=0 // pred_check
    _
  $region3: #{vae_forward.1} parent=0 // pred_check_branch
    %24 = sbr.rel (0) target = $region5
  $region4: #{vae_forward.1} parent=0 // pred_region
    _
  $region5: #{vae_forward.1} parent=0 // pred_fallthru
    _
  // Predicated region
  $region6: #{vae_forward.1} parent=0 // pred_check
    _
  $region7: #{vae_forward.1} parent=0 // pred_check_branch
    %26 = sbr.rel (0) target = $region9
  $region8: #{vae_forward.1} parent=0 // pred_region
    _
  $region9: #{vae_forward.1} parent=0 // pred_fallthru
    _
  // Predicated region
  $region10: #{vae_forward.1} parent=0 // pred_check
    _
  $region11: #{vae_forward.1} parent=0 // pred_check_branch
    %28 = sbr.rel (0) target = $region13
  $region12: #{vae_forward.1} parent=0 // pred_region
    _
  $region13: #{vae_forward.1} parent=0 // pred_fallthru
    _
  // Predicated region
  $region14: #{vae_forward.1} parent=0 // pred_check
    _
  $region15: #{vae_forward.1} parent=0 // pred_check_branch
    %30 = sbr.rel (0) target = $region17
  $region16: #{vae_forward.1} parent=0 // pred_region
    _
  $region17: #{vae_forward.1} parent=0 // pred_fallthru
    _
  // Predicated region
  $region18: #{vae_forward.1} parent=0 // pred_check
    _
  $region19: #{vae_forward.1} parent=0 // pred_check_branch
    %32 = sbr.rel (0) target = $region21
  $region20: #{vae_forward.1} parent=0 // pred_region
    _
  $region21: #{vae_forward.1} parent=0 // pred_fallthru
    _
  // Predicated region
  $region22: #{vae_forward.1} parent=0 // pred_check
    _
  $region23: #{vae_forward.1} parent=0 // pred_check_branch
    %34 = sbr.rel (0) target = $region25
  $region24: #{vae_forward.1} parent=0 // pred_region
    _
  $region25: #{vae_forward.1} parent=0 // pred_fallthru
    _
  // Predicated region
  $region26: #{vae_forward.1} parent=0 // pred_check
    _
  $region27: #{vae_forward.1} parent=0 // pred_check_branch
    %36 = sbr.rel (0) target = $region29
  $region28: #{vae_forward.1} parent=0 // pred_region
    _
  $region29: #{vae_forward.1} parent=0 // pred_fallthru
    _
  // Predicated region
  $region30: #{vae_forward.1} parent=0 // pred_check
    _
  $region31: #{vae_forward.1} parent=0 // pred_check_branch
    %38 = sbr.rel (0) target = $region33
  $region32: #{vae_forward.1} parent=0 // pred_region
    _
  $region33: #{vae_forward.1} parent=0 // pred_fallthru
    _
  // Predicated region
  $region34: #{vae_forward.1} parent=0 // pred_check
    _
  $region35: #{vae_forward.1} parent=0 // pred_check_branch
    %40 = sbr.rel (0) target = $region37
  $region36: #{vae_forward.1} parent=0 // pred_region
    _
  $region37: #{vae_forward.1} parent=0 // pred_fallthru
    _
  // Predicated region
  $region38: #{vae_forward.1} parent=0 // pred_check
    _
  $region39: #{vae_forward.1} parent=0 // pred_check_branch
    %42 = sbr.rel (0) target = $region41
  $region40: #{vae_forward.1} parent=0 // pred_region
    _
  $region41: #{vae_forward.1} parent=0 // pred_fallthru
    _
  // Predicated region
  $region42: #{vae_forward.1} parent=0 // pred_check
    _
  $region43: #{vae_forward.1} parent=0 // pred_check_branch
    %44 = sbr.rel (0) target = $region45
  $region44: #{vae_forward.1} parent=0 // pred_region
    _
  $region45: #{vae_forward.1} parent=0 // pred_fallthru
    _
  // Predicated region
  $region46: #{vae_forward.1} parent=0 // pred_check
    _
  $region47: #{vae_forward.1} parent=0 // pred_check_branch
    %46 = sbr.rel (0) target = $region49
  $region48: #{vae_forward.1} parent=0 // pred_region
    _
  $region49: #{vae_forward.1} parent=0 // pred_fallthru
    _
  // Predicated region
  $region50: #{vae_forward.1} parent=0 // pred_check
    _
  $region51: #{vae_forward.1} parent=0 // pred_check_branch
    %48 = sbr.rel (0) target = $region53
  $region52: #{vae_forward.1} parent=0 // pred_region
    _
  $region53: #{vae_forward.1} parent=0 // pred_fallthru
    _
  // Predicated region
  $region54: #{vae_forward.1} parent=0 // pred_check
    _
  $region55: #{vae_forward.1} parent=0 // pred_check_branch
    %50 = sbr.rel (0) target = $region57
  $region56: #{vae_forward.1} parent=0 // pred_region
    _
  $region57: #{vae_forward.1} parent=0 // pred_fallthru
    _
  // Predicated region
  $region58: #{vae_forward.1} parent=0 // pred_check
    _
  $region59: #{vae_forward.1} parent=0 // pred_check_branch
    %52 = sbr.rel (0) target = $region61
  $region60: #{vae_forward.1} parent=0 // pred_region
    _
  $region61: #{vae_forward.1} parent=0 // pred_fallthru
    _
  // Predicated region
  $region62: #{vae_forward.1} parent=0 // pred_check
    _
  $region63: #{vae_forward.1} parent=0 // pred_check_branch
    %54 = sbr.rel (0) target = $region65
  $region64: #{vae_forward.1} parent=0 // pred_region
    _
  $region65: #{vae_forward.1} parent=0 // pred_fallthru
    _
  %v56 = vld [vmem:[%s0] sm:$0xf]
  %v57 = vld [vmem:[%s0 + $0x4] sm:$0x7]
  %v58 = vld [vmem:[%s4] sm:$0xf]
  %v59 = vld [vmem:[%s4 + $0x4] sm:$0xf]
  %v60 = vld [vmem:[%s4 + $0x8] sm:$0xf]
  %v61 = vld [vmem:[%s4 + $0xc] sm:$0xf]
  %v62 = vld [vmem:[%s4 + $0x10] sm:$0xf]
  %v63 = vld [vmem:[%s4 + $0x14] sm:$0xf]
  %v64 = vld [vmem:[%s4 + $0x18] sm:$0xf]
  %v65 = vld [vmem:[%s4 + $0x1c] sm:$0x3]
  %v66 = vld [vmem:[%s1] sm:$0xf]
  %v67 = vld [vmem:[%s1 + $0x4] sm:$0x7]
  %s68 = scalar_lea.vmem %s4, 32
  %v69 = vld [vmem:[%s68] sm:$0xf]
  %v70 = vld [vmem:[%s68 + $0x4] sm:$0xf]
  %v71 = vld [vmem:[%s68 + $0x8] sm:$0xf]
  %v72 = vld [vmem:[%s68 + $0xc] sm:$0xf]
  %v73 = vld [vmem:[%s68 + $0x10] sm:$0xf]
  %v74 = vld [vmem:[%s68 + $0x14] sm:$0xf]
  %v75 = vld [vmem:[%s68 + $0x18] sm:$0xf]
  %v76 = vld [vmem:[%s68 + $0x1c] sm:$0x3]
  %v79 = vunpack.c.l.b16 %v66
  %v80 = vunpack.c.l.b16 %v67
  %v81 = vpack.c.b16 %v80, %v79
  %v90 = vunpack.c.l.b16 %v69
  %v91 = vunpack.c.l.b16 %v70
  %v92 = vunpack.c.l.b16 %v71
  %v93 = vunpack.c.l.b16 %v72
  %v94 = vunpack.c.l.b16 %v73
  %v95 = vunpack.c.l.b16 %v74
  %v96 = vunpack.c.l.b16 %v75
  %v97 = vunpack.c.l.b16 %v76
  %v98 = vpack.c.b16 %v91, %v90
  %v99 = vpack.c.b16 %v93, %v92
  %v100 = vpack.c.b16 %v95, %v94
  %v101 = vpack.c.b16 %v97, %v96
  %vm105 = vcmask 490496
  %v107 = vsel %vm105, %v81, 0
  %vm109 = vcmask 1045504
  %v111 = vsel %vm109, %v101, 0
  %113 = vmatprep.subr.bf16.mxu0 0
  %114 = vmatpush1.bf16.msra.mxu0 %v98
  %115 = vmatprep.subr.bf16.mxu0 0
  %116 = vmatpush1.bf16.msra.mxu0 %v99
  %117 = vmatprep.subr.bf16.mxu0 0
  %118 = vmatpush1.bf16.msra.mxu0 %v100
  %119 = vmatprep.subr.bf16.mxu0 0
  %120 = vmatpush1.bf16.msra.mxu0 %v111
  %121 = vmatprep.subr.bf16.mxu0 0
  %122 = vmatpush1.bf16.msra.mxu0 0
  %123 = vmatprep.subr.bf16.mxu0 0
  %124 = vmatpush1.bf16.msra.mxu0 0
  %125 = vmatprep.subr.bf16.mxu0 0
  %126 = vmatpush1.bf16.msra.mxu0 0
  %127 = vmatprep.subr.bf16.mxu0 0
  %128 = vmatpush1.bf16.msra.mxu0 0
  %129 = vmatprep.subr.bf16.mxu0 0
  %130 = vmatpush1.bf16.msra.mxu0 0
  %131 = vmatprep.subr.bf16.mxu0 0
  %132 = vmatpush1.bf16.msra.mxu0 0
  %133 = vmatprep.subr.bf16.mxu0 0
  %134 = vmatpush1.bf16.msra.mxu0 0
  %135 = vmatprep.subr.bf16.mxu0 0
  %136 = vmatpush1.bf16.msra.mxu0 0
  %137 = vmatprep.subr.bf16.mxu0 0
  %138 = vmatpush1.bf16.msra.mxu0 0
  %139 = vmatprep.subr.bf16.mxu0 0
  %140 = vmatpush1.bf16.msra.mxu0 0
  %141 = vmatprep.subr.bf16.mxu0 0
  %142 = vmatpush1.bf16.msra.mxu0 0
  %143 = vmatprep.subr.bf16.mxu0 0
  %144 = vmatpush1.bf16.msra.mxu0 0
  %145 = vmatprep.mubr.bf16.mxu0 0
  %146 = vmatmul.mubr.bf16.gmra.mrb[0].mxu0 %v107
  %v147 = vpop.f32.mrb[0].mxu0
  %v148 = vadd.f32 0.0, %v147
  %v149 = vpop.f32.mrb[0].mxu0
  %v150 = vpop.f32.mrb[0].mxu0
  %v151 = vadd.f32 0.0, %v150
  %v152 = vpop.f32.mrb[0].mxu0
  %153 = vdwg.mxu0
  %v156 = vunpack.c.l.b16 %v56
  %v157 = vunpack.c.l.b16 %v57
  %v158 = vpack.c.b16 %v157, %v156
  %v167 = vunpack.c.l.b16 %v58
  %v168 = vunpack.c.l.b16 %v59
  %v169 = vunpack.c.l.b16 %v60
  %v170 = vunpack.c.l.b16 %v61
  %v171 = vunpack.c.l.b16 %v62
  %v172 = vunpack.c.l.b16 %v63
  %v173 = vunpack.c.l.b16 %v64
  %v174 = vunpack.c.l.b16 %v65
  %v175 = vpack.c.b16 %v168, %v167
  %v176 = vpack.c.b16 %v170, %v169
  %v177 = vpack.c.b16 %v172, %v171
  %v178 = vpack.c.b16 %v174, %v173
  %v183 = vsel %vm105, %v158, 0
  %v186 = vsel %vm109, %v178, 0
  %188 = vmatprep.subr.bf16.mxu0 0
  %189 = vmatpush1.bf16.msra.mxu0 %v175
  %190 = vmatprep.subr.bf16.mxu0 0
  %191 = vmatpush1.bf16.msra.mxu0 %v176
  %192 = vmatprep.subr.bf16.mxu0 0
  %193 = vmatpush1.bf16.msra.mxu0 %v177
  %194 = vmatprep.subr.bf16.mxu0 0
  %195 = vmatpush1.bf16.msra.mxu0 %v186
  %196 = vmatprep.subr.bf16.mxu0 0
  %197 = vmatpush1.bf16.msra.mxu0 0
  %198 = vmatprep.subr.bf16.mxu0 0
  %199 = vmatpush1.bf16.msra.mxu0 0
  %200 = vmatprep.subr.bf16.mxu0 0
  %201 = vmatpush1.bf16.msra.mxu0 0
  %202 = vmatprep.subr.bf16.mxu0 0
  %203 = vmatpush1.bf16.msra.mxu0 0
  %204 = vmatprep.subr.bf16.mxu0 0
  %205 = vmatpush1.bf16.msra.mxu0 0
  %206 = vmatprep.subr.bf16.mxu0 0
  %207 = vmatpush1.bf16.msra.mxu0 0
  %208 = vmatprep.subr.bf16.mxu0 0
  %209 = vmatpush1.bf16.msra.mxu0 0
  %210 = vmatprep.subr.bf16.mxu0 0
  %211 = vmatpush1.bf16.msra.mxu0 0
  %212 = vmatprep.subr.bf16.mxu0 0
  %213 = vmatpush1.bf16.msra.mxu0 0
  %214 = vmatprep.subr.bf16.mxu0 0
  %215 = vmatpush1.bf16.msra.mxu0 0
  %216 = vmatprep.subr.bf16.mxu0 0
  %217 = vmatpush1.bf16.msra.mxu0 0
  %218 = vmatprep.subr.bf16.mxu0 0
  %219 = vmatpush1.bf16.msra.mxu0 0
  %220 = vmatprep.mubr.bf16.mxu0 0
  %221 = vmatmul.mubr.bf16.gmra.mrb[0].mxu0 %v183
  %v222 = vpop.f32.mrb[0].mxu0
  %v223 = vadd.f32 %v148, %v222
  %v224 = vpop.f32.mrb[0].mxu0
  %v225 = vpop.f32.mrb[0].mxu0
  %v226 = vadd.f32 %v151, %v225
  %v227 = vpop.f32.mrb[0].mxu0
  %228 = vdwg.mxu0
  %v229 = vld [vmem:[%s5] sm:$0x1]
  %v230 = vlaneseq
  %v231 = vshrl.u32 %v230, 7
  %v232 = vsub.s32 0, %v231
  %v233 = vrot.slane %v229, %v232
  %v234 = vadd.f32 %v223, %v233
  %v235 = vadd.f32 %v226, %v233
  %v236 = vmax.f32 %v234, 0.0
  %v237 = vmax.f32 %v235, 0.0
  %s238 = scalar_lea.vmem %s4, 64
  %v239 = vld [vmem:[%s238] sm:$0xf]
  %v240 = vld [vmem:[%s238 + $0x4] sm:$0xf]
  %v241 = vld [vmem:[%s238 + $0x8] sm:$0xf]
  %v242 = vld [vmem:[%s238 + $0xc] sm:$0xf]
  %v243 = vld [vmem:[%s238 + $0x10] sm:$0xf]
  %v244 = vld [vmem:[%s238 + $0x14] sm:$0xf]
  %v245 = vld [vmem:[%s238 + $0x18] sm:$0xf]
  %v246 = vld [vmem:[%s238 + $0x1c] sm:$0x3]
  %v247 = vld [vmem:[%s2] sm:$0xf]
  %v248 = vld [vmem:[%s2 + $0x4] sm:$0x7]
  %s249 = scalar_lea.vmem %s4, 96
  %v250 = vld [vmem:[%s249] sm:$0xf]
  %v251 = vld [vmem:[%s249 + $0x4] sm:$0xf]
  %v252 = vld [vmem:[%s249 + $0x8] sm:$0xf]
  %v253 = vld [vmem:[%s249 + $0xc] sm:$0xf]
  %v254 = vld [vmem:[%s249 + $0x10] sm:$0xf]
  %v255 = vld [vmem:[%s249 + $0x14] sm:$0xf]
  %v256 = vld [vmem:[%s249 + $0x18] sm:$0xf]
  %v257 = vld [vmem:[%s249 + $0x1c] sm:$0x3]
  %v260 = vunpack.c.l.b16 %v247
  %v261 = vunpack.c.l.b16 %v248
  %v262 = vpack.c.b16 %v261, %v260
  %v271 = vunpack.c.l.b16 %v250
  %v272 = vunpack.c.l.b16 %v251
  %v273 = vunpack.c.l.b16 %v252
  %v274 = vunpack.c.l.b16 %v253
  %v275 = vunpack.c.l.b16 %v254
  %v276 = vunpack.c.l.b16 %v255
  %v277 = vunpack.c.l.b16 %v256
  %v278 = vunpack.c.l.b16 %v257
  %v279 = vpack.c.b16 %v272, %v271
  %v280 = vpack.c.b16 %v274, %v273
  %v281 = vpack.c.b16 %v276, %v275
  %v282 = vpack.c.b16 %v278, %v277
  %v287 = vsel %vm105, %v262, 0
  %v290 = vsel %vm109, %v282, 0
  %292 = vmatprep.subr.bf16.mxu0 0
  %293 = vmatpush1.bf16.msra.mxu0 %v279
  %294 = vmatprep.subr.bf16.mxu0 0
  %295 = vmatpush1.bf16.msra.mxu0 %v280
  %296 = vmatprep.subr.bf16.mxu0 0
  %297 = vmatpush1.bf16.msra.mxu0 %v281
  %298 = vmatprep.subr.bf16.mxu0 0
  %299 = vmatpush1.bf16.msra.mxu0 %v290
  %300 = vmatprep.subr.bf16.mxu0 0
  %301 = vmatpush1.bf16.msra.mxu0 0
  %302 = vmatprep.subr.bf16.mxu0 0
  %303 = vmatpush1.bf16.msra.mxu0 0
  %304 = vmatprep.subr.bf16.mxu0 0
  %305 = vmatpush1.bf16.msra.mxu0 0
  %306 = vmatprep.subr.bf16.mxu0 0
  %307 = vmatpush1.bf16.msra.mxu0 0
  %308 = vmatprep.subr.bf16.mxu0 0
  %309 = vmatpush1.bf16.msra.mxu0 0
  %310 = vmatprep.subr.bf16.mxu0 0
  %311 = vmatpush1.bf16.msra.mxu0 0
  %312 = vmatprep.subr.bf16.mxu0 0
  %313 = vmatpush1.bf16.msra.mxu0 0
  %314 = vmatprep.subr.bf16.mxu0 0
  %315 = vmatpush1.bf16.msra.mxu0 0
  %316 = vmatprep.subr.bf16.mxu0 0
  %317 = vmatpush1.bf16.msra.mxu0 0
  %318 = vmatprep.subr.bf16.mxu0 0
  %319 = vmatpush1.bf16.msra.mxu0 0
  %320 = vmatprep.subr.bf16.mxu0 0
  %321 = vmatpush1.bf16.msra.mxu0 0
  %322 = vmatprep.subr.bf16.mxu0 0
  %323 = vmatpush1.bf16.msra.mxu0 0
  %324 = vmatprep.mubr.bf16.mxu0 0
  %325 = vmatmul.mubr.bf16.gmra.mrb[0].mxu0 %v287
  %v326 = vpop.f32.mrb[0].mxu0
  %v327 = vadd.f32 0.0, %v326
  %v328 = vpop.f32.mrb[0].mxu0
  %v329 = vpop.f32.mrb[0].mxu0
  %v330 = vadd.f32 0.0, %v329
  %v331 = vpop.f32.mrb[0].mxu0
  %332 = vdwg.mxu0
  %v341 = vunpack.c.l.b16 %v239
  %v342 = vunpack.c.l.b16 %v240
  %v343 = vunpack.c.l.b16 %v241
  %v344 = vunpack.c.l.b16 %v242
  %v345 = vunpack.c.l.b16 %v243
  %v346 = vunpack.c.l.b16 %v244
  %v347 = vunpack.c.l.b16 %v245
  %v348 = vunpack.c.l.b16 %v246
  %v349 = vpack.c.b16 %v342, %v341
  %v350 = vpack.c.b16 %v344, %v343
  %v351 = vpack.c.b16 %v346, %v345
  %v352 = vpack.c.b16 %v348, %v347
  %v357 = vsel %vm109, %v352, 0
  %359 = vmatprep.subr.bf16.mxu0 0
  %360 = vmatpush1.bf16.msra.mxu0 %v349
  %361 = vmatprep.subr.bf16.mxu0 0
  %362 = vmatpush1.bf16.msra.mxu0 %v350
  %363 = vmatprep.subr.bf16.mxu0 0
  %364 = vmatpush1.bf16.msra.mxu0 %v351
  %365 = vmatprep.subr.bf16.mxu0 0
  %366 = vmatpush1.bf16.msra.mxu0 %v357
  %367 = vmatprep.subr.bf16.mxu0 0
  %368 = vmatpush1.bf16.msra.mxu0 0
  %369 = vmatprep.subr.bf16.mxu0 0
  %370 = vmatpush1.bf16.msra.mxu0 0
  %371 = vmatprep.subr.bf16.mxu0 0
  %372 = vmatpush1.bf16.msra.mxu0 0
  %373 = vmatprep.subr.bf16.mxu0 0
  %374 = vmatpush1.bf16.msra.mxu0 0
  %375 = vmatprep.subr.bf16.mxu0 0
  %376 = vmatpush1.bf16.msra.mxu0 0
  %377 = vmatprep.subr.bf16.mxu0 0
  %378 = vmatpush1.bf16.msra.mxu0 0
  %379 = vmatprep.subr.bf16.mxu0 0
  %380 = vmatpush1.bf16.msra.mxu0 0
  %381 = vmatprep.subr.bf16.mxu0 0
  %382 = vmatpush1.bf16.msra.mxu0 0
  %383 = vmatprep.subr.bf16.mxu0 0
  %384 = vmatpush1.bf16.msra.mxu0 0
  %385 = vmatprep.subr.bf16.mxu0 0
  %386 = vmatpush1.bf16.msra.mxu0 0
  %387 = vmatprep.subr.bf16.mxu0 0
  %388 = vmatpush1.bf16.msra.mxu0 0
  %389 = vmatprep.subr.bf16.mxu0 0
  %390 = vmatpush1.bf16.msra.mxu0 0
  %391 = vmatprep.mubr.bf16.mxu0 0
  %392 = vmatmul.mubr.bf16.gmra.mrb[0].mxu0 %v107
  %v393 = vpop.f32.mrb[0].mxu0
  %v394 = vadd.f32 %v327, %v393
  %v395 = vpop.f32.mrb[0].mxu0
  %v396 = vpop.f32.mrb[0].mxu0
  %v397 = vadd.f32 %v330, %v396
  %v398 = vpop.f32.mrb[0].mxu0
  %399 = vdwg.mxu0
  %v400 = vld [vmem:[%s5 + $0x1] sm:$0x1]
  %v401 = vlaneseq
  %v402 = vshrl.u32 %v401, 7
  %v403 = vsub.s32 0, %v402
  %v404 = vrot.slane %v400, %v403
  %v405 = vadd.f32 %v394, %v404
  %v406 = vadd.f32 %v397, %v404
  %v407 = vmax.f32 %v405, 0.0
  %v408 = vmax.f32 %v406, 0.0
  %vm409 = vcmask 1046528
  %v410 = vsel %vm409, %v236, 0.0
  %v412 = vrot.slane %v407, 7
  %vm414 = vcmask 1040384
  %v415 = vsel %vm414, 0.0, %v412
  %v416 = vadd.f32 %v410, %v415
  %v419 = vrot.slane %v236, 7
  %v420 = vrot.slane %v237, 7
  %v421 = vsel %vm414, %v419, %v420
  %v423 = vsel %vm409, %v421, 0.0
  %vm425 = vcmask 1041408
  %v426 = vrot.slane %v407, 6
  %v427 = vrot.slane %v408, 6
  %v428 = vsel %vm425, %v426, %v427
  %v430 = vsel %vm414, 0.0, %v428
  %v431 = vadd.f32 %v423, %v430
  %v433 = vrot.slane %v431, 1
  %v435 = vsel %vm409, %v416, %v433
  %v436 = vpack.c.bf16 %v433, %v435
  %v438 = vrot.slane %v416, 1
  %v440 = vrot.slane %v431, 2
  %v442 = vsel %vm409, %v438, %v440
  %v443 = vpack.c.bf16 %v440, %v442
  %v444 = vld [vmem:[%s6] sm:$0xf]
  %v445 = vld [vmem:[%s6 + $0x4] sm:$0xf]
  %v446 = vld [vmem:[%s6 + $0x8] sm:$0xf]
  %v447 = vld [vmem:[%s6 + $0xc] sm:$0xf]
  %v448 = vld [vmem:[%s6 + $0x10] sm:$0xf]
  %v449 = vld [vmem:[%s6 + $0x14] sm:$0xf]
  %v450 = vld [vmem:[%s6 + $0x18] sm:$0xf]
  %v451 = vld [vmem:[%s6 + $0x1c] sm:$0xf]
  %v452 = vld [vmem:[%s6 + $0x20] sm:$0xf]
  %v453 = vld [vmem:[%s6 + $0x24] sm:$0xf]
  %v454 = vld [vmem:[%s6 + $0x28] sm:$0xf]
  %v455 = vld [vmem:[%s6 + $0x2c] sm:$0xf]
  %v456 = vld [vmem:[%s6 + $0x30] sm:$0xf]
  %v457 = vld [vmem:[%s6 + $0x34] sm:$0xf]
  %v458 = vld [vmem:[%s6 + $0x38] sm:$0xf]
  %v459 = vld [vmem:[%s6 + $0x3c] sm:$0xf]
  %s460 = scalar_lea.vmem %s6, 64
  %v461 = vld [vmem:[%s460] sm:$0xf]
  %v462 = vld [vmem:[%s460 + $0x4] sm:$0xf]
  %v463 = vld [vmem:[%s460 + $0x8] sm:$0xf]
  %v464 = vld [vmem:[%s460 + $0xc] sm:$0xf]
  %v465 = vld [vmem:[%s460 + $0x10] sm:$0xf]
  %v466 = vld [vmem:[%s460 + $0x14] sm:$0xf]
  %v467 = vld [vmem:[%s460 + $0x18] sm:$0xf]
  %v468 = vld [vmem:[%s460 + $0x1c] sm:$0xf]
  %v469 = vld [vmem:[%s460 + $0x20] sm:$0xf]
  %v470 = vld [vmem:[%s460 + $0x24] sm:$0xf]
  %v471 = vld [vmem:[%s460 + $0x28] sm:$0xf]
  %v472 = vld [vmem:[%s460 + $0x2c] sm:$0xf]
  %v473 = vld [vmem:[%s460 + $0x30] sm:$0xf]
  %v474 = vld [vmem:[%s460 + $0x34] sm:$0xf]
  %v475 = vld [vmem:[%s460 + $0x38] sm:$0xf]
  %v476 = vld [vmem:[%s460 + $0x3c] sm:$0xf]
  %v493 = vunpack.c.l.b16 %v461
  %v494 = vunpack.c.l.b16 %v462
  %v495 = vunpack.c.l.b16 %v463
  %v496 = vunpack.c.l.b16 %v464
  %v497 = vunpack.c.l.b16 %v465
  %v498 = vunpack.c.l.b16 %v466
  %v499 = vunpack.c.l.b16 %v467
  %v500 = vunpack.c.l.b16 %v468
  %v501 = vunpack.c.l.b16 %v469
  %v502 = vunpack.c.l.b16 %v470
  %v503 = vunpack.c.l.b16 %v471
  %v504 = vunpack.c.l.b16 %v472
  %v505 = vunpack.c.l.b16 %v473
  %v506 = vunpack.c.l.b16 %v474
  %v507 = vunpack.c.l.b16 %v475
  %v508 = vunpack.c.l.b16 %v476
  %v509 = vpack.c.b16 %v494, %v493
  %v510 = vpack.c.b16 %v496, %v495
  %v511 = vpack.c.b16 %v498, %v497
  %v512 = vpack.c.b16 %v500, %v499
  %v513 = vpack.c.b16 %v502, %v501
  %v514 = vpack.c.b16 %v504, %v503
  %v515 = vpack.c.b16 %v506, %v505
  %v516 = vpack.c.b16 %v508, %v507
  %525 = vmatprep.subr.bf16.mxu0 0
  %526 = vmatpush1.bf16.msra.mxu0 %v509
  %527 = vmatprep.subr.bf16.mxu0 0
  %528 = vmatpush1.bf16.msra.mxu0 %v510
  %529 = vmatprep.subr.bf16.mxu0 0
  %530 = vmatpush1.bf16.msra.mxu0 %v511
  %531 = vmatprep.subr.bf16.mxu0 0
  %532 = vmatpush1.bf16.msra.mxu0 %v512
  %533 = vmatprep.subr.bf16.mxu0 0
  %534 = vmatpush1.bf16.msra.mxu0 %v513
  %535 = vmatprep.subr.bf16.mxu0 0
  %536 = vmatpush1.bf16.msra.mxu0 %v514
  %537 = vmatprep.subr.bf16.mxu0 0
  %538 = vmatpush1.bf16.msra.mxu0 %v515
  %539 = vmatprep.subr.bf16.mxu0 0
  %540 = vmatpush1.bf16.msra.mxu0 %v516
  %541 = vmatprep.subr.bf16.mxu0 0
  %542 = vmatpush1.bf16.msra.mxu0 0
  %543 = vmatprep.subr.bf16.mxu0 0
  %544 = vmatpush1.bf16.msra.mxu0 0
  %545 = vmatprep.subr.bf16.mxu0 0
  %546 = vmatpush1.bf16.msra.mxu0 0
  %547 = vmatprep.subr.bf16.mxu0 0
  %548 = vmatpush1.bf16.msra.mxu0 0
  %549 = vmatprep.subr.bf16.mxu0 0
  %550 = vmatpush1.bf16.msra.mxu0 0
  %551 = vmatprep.subr.bf16.mxu0 0
  %552 = vmatpush1.bf16.msra.mxu0 0
  %553 = vmatprep.subr.bf16.mxu0 0
  %554 = vmatpush1.bf16.msra.mxu0 0
  %555 = vmatprep.subr.bf16.mxu0 0
  %556 = vmatpush1.bf16.msra.mxu0 0
  %557 = vmatprep.mubr.bf16.mxu0 0
  %558 = vmatmul.mubr.bf16.gmra.mrb[0].mxu0 %v443
  %v559 = vpop.f32.mrb[0].mxu0
  %v560 = vadd.f32 0.0, %v559
  %v561 = vpop.f32.mrb[0].mxu0
  %v562 = vpop.f32.mrb[0].mxu0
  %v563 = vadd.f32 0.0, %v562
  %v564 = vpop.f32.mrb[0].mxu0
  %565 = vdwg.mxu0
  %v582 = vunpack.c.l.b16 %v444
  %v583 = vunpack.c.l.b16 %v445
  %v584 = vunpack.c.l.b16 %v446
  %v585 = vunpack.c.l.b16 %v447
  %v586 = vunpack.c.l.b16 %v448
  %v587 = vunpack.c.l.b16 %v449
  %v588 = vunpack.c.l.b16 %v450
  %v589 = vunpack.c.l.b16 %v451
  %v590 = vunpack.c.l.b16 %v452
  %v591 = vunpack.c.l.b16 %v453
  %v592 = vunpack.c.l.b16 %v454
  %v593 = vunpack.c.l.b16 %v455
  %v594 = vunpack.c.l.b16 %v456
  %v595 = vunpack.c.l.b16 %v457
  %v596 = vunpack.c.l.b16 %v458
  %v597 = vunpack.c.l.b16 %v459
  %v598 = vpack.c.b16 %v583, %v582
  %v599 = vpack.c.b16 %v585, %v584
  %v600 = vpack.c.b16 %v587, %v586
  %v601 = vpack.c.b16 %v589, %v588
  %v602 = vpack.c.b16 %v591, %v590
  %v603 = vpack.c.b16 %v593, %v592
  %v604 = vpack.c.b16 %v595, %v594
  %v605 = vpack.c.b16 %v597, %v596
  %614 = vmatprep.subr.bf16.mxu0 0
  %615 = vmatpush1.bf16.msra.mxu0 %v598
  %616 = vmatprep.subr.bf16.mxu0 0
  %617 = vmatpush1.bf16.msra.mxu0 %v599
  %618 = vmatprep.subr.bf16.mxu0 0
  %619 = vmatpush1.bf16.msra.mxu0 %v600
  %620 = vmatprep.subr.bf16.mxu0 0
  %621 = vmatpush1.bf16.msra.mxu0 %v601
  %622 = vmatprep.subr.bf16.mxu0 0
  %623 = vmatpush1.bf16.msra.mxu0 %v602
  %624 = vmatprep.subr.bf16.mxu0 0
  %625 = vmatpush1.bf16.msra.mxu0 %v603
  %626 = vmatprep.subr.bf16.mxu0 0
  %627 = vmatpush1.bf16.msra.mxu0 %v604
  %628 = vmatprep.subr.bf16.mxu0 0
  %629 = vmatpush1.bf16.msra.mxu0 %v605
  %630 = vmatprep.subr.bf16.mxu0 0
  %631 = vmatpush1.bf16.msra.mxu0 0
  %632 = vmatprep.subr.bf16.mxu0 0
  %633 = vmatpush1.bf16.msra.mxu0 0
  %634 = vmatprep.subr.bf16.mxu0 0
  %635 = vmatpush1.bf16.msra.mxu0 0
  %636 = vmatprep.subr.bf16.mxu0 0
  %637 = vmatpush1.bf16.msra.mxu0 0
  %638 = vmatprep.subr.bf16.mxu0 0
  %639 = vmatpush1.bf16.msra.mxu0 0
  %640 = vmatprep.subr.bf16.mxu0 0
  %641 = vmatpush1.bf16.msra.mxu0 0
  %642 = vmatprep.subr.bf16.mxu0 0
  %643 = vmatpush1.bf16.msra.mxu0 0
  %644 = vmatprep.subr.bf16.mxu0 0
  %645 = vmatpush1.bf16.msra.mxu0 0
  %646 = vmatprep.mubr.bf16.mxu0 0
  %647 = vmatmul.mubr.bf16.gmra.mrb[0].mxu0 %v436
  %v648 = vpop.f32.mrb[0].mxu0
  %v649 = vadd.f32 %v560, %v648
  %v650 = vpop.f32.mrb[0].mxu0
  %v651 = vpop.f32.mrb[0].mxu0
  %v652 = vadd.f32 %v563, %v651
  %v653 = vpop.f32.mrb[0].mxu0
  %654 = vdwg.mxu0
  %v655 = vld [vmem:[%s7] sm:$0x1]
  %v657 = vlaneseq
  %v658 = vshrl.u32 %v657, 7
  %v659 = vsub.s32 0, %v658
  %v660 = vrot.slane %v655, %v659
  %v662 = vadd.f32 %v649, %v660
  %v663 = vadd.f32 %v652, %v660
  %v664 = vmax.f32 %v662, 0.0
  %v665 = vmax.f32 %v663, 0.0
  %v667 = vrot.slane %v664, 1
  %668 = vrot.lane.b32.xlu0 %v667, 56
  %v669 = vpop.permute.xlu0 %668
  %v671 = vrot.slane %v664, 2
  %672 = vrot.lane.b32.xlu0 %v671, 112
  %v673 = vpop.permute.xlu0 %672
  %v675 = vrot.slane %v664, 3
  %676 = vrot.lane.b32.xlu0 %v675, 40
  %v677 = vpop.permute.xlu0 %676
  %v679 = vrot.slane %v664, 4
  %680 = vrot.lane.b32.xlu0 %v679, 96
  %v681 = vpop.permute.xlu0 %680
  %v683 = vrot.slane %v664, 5
  %684 = vrot.lane.b32.xlu0 %v683, 24
  %v685 = vpop.permute.xlu0 %684
  %v687 = vrot.slane %v664, 6
  %688 = vrot.lane.b32.xlu0 %v687, 80
  %v689 = vpop.permute.xlu0 %688
  %vm691 = vcmask 457728
  %v692 = vsel %vm691, %v664, %v669
  %vm693 = vcmask 916480
  %v694 = vsel %vm693, %v692, %v673
  %vm695 = vcmask 326656
  %v696 = vsel %vm695, %v673, %v677
  %vm697 = vcmask 785408
  %v698 = vsel %vm697, %v696, %v681
  %vm699 = vcmask 195584
  %v700 = vsel %vm699, %v681, %v685
  %vm701 = vcmask 654336
  %v702 = vsel %vm701, %v700, %v689
  %v704 = vrot.slane %v665, 1
  %705 = vrot.lane.b32.xlu0 %v704, 56
  %v706 = vpop.permute.xlu0 %705
  %v708 = vrot.slane %v665, 2
  %709 = vrot.lane.b32.xlu0 %v708, 112
  %v710 = vpop.permute.xlu0 %709
  %v712 = vrot.slane %v665, 3
  %713 = vrot.lane.b32.xlu0 %v712, 40
  %v714 = vpop.permute.xlu0 %713
  %v716 = vrot.slane %v665, 4
  %717 = vrot.lane.b32.xlu0 %v716, 96
  %v718 = vpop.permute.xlu0 %717
  %v720 = vrot.slane %v665, 5
  %721 = vrot.lane.b32.xlu0 %v720, 24
  %v722 = vpop.permute.xlu0 %721
  %v724 = vrot.slane %v665, 6
  %725 = vrot.lane.b32.xlu0 %v724, 80
  %v726 = vpop.permute.xlu0 %725
  %v728 = vsel %vm691, %v664, %v706
  %v729 = vsel %vm693, %v728, %v710
  %v730 = vsel %vm695, %v710, %v714
  %v731 = vsel %vm697, %v730, %v718
  %v732 = vsel %vm699, %v718, %v722
  %v733 = vsel %vm701, %v732, %v726
  %v737 = vrot.slane %v729, 6
  %v738 = vrot.slane %v731, 6
  %v739 = vrot.slane %v733, 6
  %v740 = vrot.slane %v726, 6
  %v745 = vsel %vm414, %v694, %v737
  %v746 = vsel %vm414, %v698, %v738
  %v747 = vsel %vm414, %v702, %v739
  %v748 = vsel %vm414, %v689, %v740
  %v749 = vpack.c.bf16 %v745, %v745
  %v750 = vpack.c.bf16 %v746, %v746
  %v751 = vpack.c.bf16 %v747, %v747
  %v752 = vpack.c.bf16 %v748, %v748
  %v753 = vld [vmem:[%s8] sm:$0xf]
  %v754 = vld [vmem:[%s8 + $0x4] sm:$0xf]
  %v755 = vld [vmem:[%s8 + $0x8] sm:$0xf]
  %v756 = vld [vmem:[%s8 + $0xc] sm:$0xf]
  %v757 = vld [vmem:[%s8 + $0x10] sm:$0xf]
  %v758 = vld [vmem:[%s8 + $0x14] sm:$0xf]
  %v759 = vld [vmem:[%s8 + $0x18] sm:$0xf]
  %v760 = vld [vmem:[%s8 + $0x1c] sm:$0xf]
  %v761 = vld [vmem:[%s8 + $0x20] sm:$0xf]
  %v762 = vld [vmem:[%s8 + $0x24] sm:$0xf]
  %v763 = vld [vmem:[%s8 + $0x28] sm:$0xf]
  %v764 = vld [vmem:[%s8 + $0x2c] sm:$0xf]
  %v765 = vld [vmem:[%s8 + $0x30] sm:$0xf]
  %v766 = vld [vmem:[%s8 + $0x34] sm:$0xf]
  %v767 = vld [vmem:[%s8 + $0x38] sm:$0xf]
  %v768 = vld [vmem:[%s8 + $0x3c] sm:$0xf]
  %v769 = vld [vmem:[%s8 + $0x40] sm:$0xf]
  %v770 = vld [vmem:[%s8 + $0x44] sm:$0xf]
  %v771 = vld [vmem:[%s8 + $0x48] sm:$0xf]
  %v772 = vld [vmem:[%s8 + $0x4c] sm:$0xf]
  %v773 = vld [vmem:[%s8 + $0x50] sm:$0xf]
  %v774 = vld [vmem:[%s8 + $0x54] sm:$0xf]
  %v775 = vld [vmem:[%s8 + $0x58] sm:$0xf]
  %v776 = vld [vmem:[%s8 + $0x5c] sm:$0xf]
  %v777 = vld [vmem:[%s8 + $0x60] sm:$0xf]
  %v778 = vld [vmem:[%s8 + $0x64] sm:$0xf]
  %v779 = vld [vmem:[%s8 + $0x68] sm:$0xf]
  %v780 = vld [vmem:[%s8 + $0x6c] sm:$0xf]
  %v781 = vld [vmem:[%s8 + $0x70] sm:$0xf]
  %v782 = vld [vmem:[%s8 + $0x74] sm:$0xf]
  %v783 = vld [vmem:[%s8 + $0x78] sm:$0xf]
  %v784 = vld [vmem:[%s8 + $0x7c] sm:$0xf]
  %v785 = vld [vmem:[%s8 + $0x80] sm:$0xf]
  %v786 = vld [vmem:[%s8 + $0x84] sm:$0xf]
  %v787 = vld [vmem:[%s8 + $0x88] sm:$0xf]
  %v788 = vld [vmem:[%s8 + $0x8c] sm:$0xf]
  %v789 = vld [vmem:[%s8 + $0x90] sm:$0xf]
  %v790 = vld [vmem:[%s8 + $0x94] sm:$0xf]
  %v791 = vld [vmem:[%s8 + $0x98] sm:$0xf]
  %v792 = vld [vmem:[%s8 + $0x9c] sm:$0xf]
  %v793 = vld [vmem:[%s8 + $0xa0] sm:$0xf]
  %v794 = vld [vmem:[%s8 + $0xa4] sm:$0xf]
  %v795 = vld [vmem:[%s8 + $0xa8] sm:$0xf]
  %v796 = vld [vmem:[%s8 + $0xac] sm:$0xf]
  %v797 = vld [vmem:[%s8 + $0xb0] sm:$0xf]
  %v798 = vld [vmem:[%s8 + $0xb4] sm:$0xf]
  %v799 = vld [vmem:[%s8 + $0xb8] sm:$0xf]
  %v800 = vld [vmem:[%s8 + $0xbc] sm:$0xf]
  %v801 = vld [vmem:[%s8 + $0xc0] sm:$0xf]
  %v802 = vld [vmem:[%s9] sm:$0x1]
  %v804 = vlaneseq
  %v805 = vshrl.u32 %v804, 7
  %v806 = vsub.s32 0, %v805
  %v807 = vrot.slane %v802, %v806
  %v858 = vunpack.c.l.b16 %v753
  %v859 = vunpack.c.l.b16 %v754
  %v860 = vunpack.c.l.b16 %v755
  %v861 = vunpack.c.l.b16 %v756
  %v862 = vunpack.c.l.b16 %v757
  %v863 = vunpack.c.l.b16 %v758
  %v864 = vunpack.c.l.b16 %v759
  %v865 = vunpack.c.l.b16 %v760
  %v866 = vunpack.c.l.b16 %v761
  %v867 = vunpack.c.l.b16 %v762
  %v868 = vunpack.c.l.b16 %v763
  %v869 = vunpack.c.l.b16 %v764
  %v870 = vunpack.c.l.b16 %v765
  %v871 = vunpack.c.l.b16 %v766
  %v872 = vunpack.c.l.b16 %v767
  %v873 = vunpack.c.l.b16 %v768
  %v874 = vunpack.c.l.b16 %v769
  %v875 = vunpack.c.l.b16 %v770
  %v876 = vunpack.c.l.b16 %v771
  %v877 = vunpack.c.l.b16 %v772
  %v878 = vunpack.c.l.b16 %v773
  %v879 = vunpack.c.l.b16 %v774
  %v880 = vunpack.c.l.b16 %v775
  %v881 = vunpack.c.l.b16 %v776
  %v882 = vunpack.c.l.b16 %v777
  %v883 = vunpack.c.l.b16 %v778
  %v884 = vunpack.c.l.b16 %v779
  %v885 = vunpack.c.l.b16 %v780
  %v886 = vunpack.c.l.b16 %v781
  %v887 = vunpack.c.l.b16 %v782
  %v888 = vunpack.c.l.b16 %v783
  %v889 = vunpack.c.l.b16 %v784
  %v890 = vunpack.c.l.b16 %v785
  %v891 = vunpack.c.l.b16 %v786
  %v892 = vunpack.c.l.b16 %v787
  %v893 = vunpack.c.l.b16 %v788
  %v894 = vunpack.c.l.b16 %v789
  %v895 = vunpack.c.l.b16 %v790
  %v896 = vunpack.c.l.b16 %v791
  %v897 = vunpack.c.l.b16 %v792
  %v898 = vunpack.c.l.b16 %v793
  %v899 = vunpack.c.l.b16 %v794
  %v900 = vunpack.c.l.b16 %v795
  %v901 = vunpack.c.l.b16 %v796
  %v902 = vunpack.c.l.b16 %v797
  %v903 = vunpack.c.l.b16 %v798
  %v904 = vunpack.c.l.b16 %v799
  %v905 = vunpack.c.l.b16 %v800
  %v906 = vunpack.c.l.b16 %v801
  %v907 = vpack.c.b16 %v859, %v858
  %v908 = vpack.c.b16 %v861, %v860
  %v909 = vpack.c.b16 %v863, %v862
  %v910 = vpack.c.b16 %v865, %v864
  %v911 = vpack.c.b16 %v867, %v866
  %v912 = vpack.c.b16 %v869, %v868
  %v913 = vpack.c.b16 %v871, %v870
  %v914 = vpack.c.b16 %v873, %v872
  %v915 = vpack.c.b16 %v875, %v874
  %v916 = vpack.c.b16 %v877, %v876
  %v917 = vpack.c.b16 %v879, %v878
  %v918 = vpack.c.b16 %v881, %v880
  %v919 = vpack.c.b16 %v883, %v882
  %v920 = vpack.c.b16 %v885, %v884
  %v921 = vpack.c.b16 %v887, %v886
  %v922 = vpack.c.b16 %v889, %v888
  %v923 = vpack.c.b16 %v891, %v890
  %v924 = vpack.c.b16 %v893, %v892
  %v925 = vpack.c.b16 %v895, %v894
  %v926 = vpack.c.b16 %v897, %v896
  %v927 = vpack.c.b16 %v899, %v898
  %v928 = vpack.c.b16 %v901, %v900
  %v929 = vpack.c.b16 %v903, %v902
  %v930 = vpack.c.b16 %v905, %v904
  %v931 = vpack.c.b16 %v906, %v906
  %vm956 = vcmask 64512
  %v958 = vsel %vm956, %v752, 0
  %vm960 = vcmask 1043456
  %v962 = vsel %vm960, %v931, 0
  %964 = vmatprep.subr.bf16.mxu0 0
  %965 = vmatpush1.bf16.msra.mxu0 %v907
  %966 = vmatprep.subr.bf16.mxu0 0
  %967 = vmatpush1.bf16.msra.mxu0 %v908
  %968 = vmatprep.subr.bf16.mxu0 0
  %969 = vmatpush1.bf16.msra.mxu0 %v909
  %970 = vmatprep.subr.bf16.mxu0 0
  %971 = vmatpush1.bf16.msra.mxu0 %v910
  %972 = vmatprep.subr.bf16.mxu0 0
  %973 = vmatpush1.bf16.msra.mxu0 %v911
  %974 = vmatprep.subr.bf16.mxu0 0
  %975 = vmatpush1.bf16.msra.mxu0 %v912
  %976 = vmatprep.subr.bf16.mxu0 0
  %977 = vmatpush1.bf16.msra.mxu0 %v913
  %978 = vmatprep.subr.bf16.mxu0 0
  %979 = vmatpush1.bf16.msra.mxu0 %v914
  %980 = vmatprep.subr.bf16.mxu0 0
  %981 = vmatpush1.bf16.msra.mxu0 %v915
  %982 = vmatprep.subr.bf16.mxu0 0
  %983 = vmatpush1.bf16.msra.mxu0 %v916
  %984 = vmatprep.subr.bf16.mxu0 0
  %985 = vmatpush1.bf16.msra.mxu0 %v917
  %986 = vmatprep.subr.bf16.mxu0 0
  %987 = vmatpush1.bf16.msra.mxu0 %v918
  %988 = vmatprep.subr.bf16.mxu0 0
  %989 = vmatpush1.bf16.msra.mxu0 %v919
  %990 = vmatprep.subr.bf16.mxu0 0
  %991 = vmatpush1.bf16.msra.mxu0 %v920
  %992 = vmatprep.subr.bf16.mxu0 0
  %993 = vmatpush1.bf16.msra.mxu0 %v921
  %994 = vmatprep.subr.bf16.mxu0 0
  %995 = vmatpush1.bf16.msra.mxu0 %v922
  %996 = vmatprep.mubr.bf16.mxu0 %v750
  %997 = vmatmul.mubr.bf16.gmra.mrb[0].mxu0 %v749
  %v998 = vpop.f32.mrb[0].mxu0
  %v999 = vadd.f32 %v807, %v998
  %v1000 = vpop.f32.mrb[0].mxu0
  %v1001 = vpop.f32.mrb[0].mxu0
  %v1002 = vpop.f32.mrb[0].mxu0
  %1003 = vdwg.mxu0
  %1004 = vmatprep.subr.bf16.mxu0 0
  %1005 = vmatpush1.bf16.msra.mxu0 %v923
  %1006 = vmatprep.subr.bf16.mxu0 0
  %1007 = vmatpush1.bf16.msra.mxu0 %v924
  %1008 = vmatprep.subr.bf16.mxu0 0
  %1009 = vmatpush1.bf16.msra.mxu0 %v925
  %1010 = vmatprep.subr.bf16.mxu0 0
  %1011 = vmatpush1.bf16.msra.mxu0 %v926
  %1012 = vmatprep.subr.bf16.mxu0 0
  %1013 = vmatpush1.bf16.msra.mxu0 %v927
  %1014 = vmatprep.subr.bf16.mxu0 0
  %1015 = vmatpush1.bf16.msra.mxu0 %v928
  %1016 = vmatprep.subr.bf16.mxu0 0
  %1017 = vmatpush1.bf16.msra.mxu0 %v929
  %1018 = vmatprep.subr.bf16.mxu0 0
  %1019 = vmatpush1.bf16.msra.mxu0 %v930
  %1020 = vmatprep.subr.bf16.mxu0 0
  %1021 = vmatpush1.bf16.msra.mxu0 %v962
  %1022 = vmatprep.subr.bf16.mxu0 0
  %1023 = vmatpush1.bf16.msra.mxu0 0
  %1024 = vmatprep.subr.bf16.mxu0 0
  %1025 = vmatpush1.bf16.msra.mxu0 0
  %1026 = vmatprep.subr.bf16.mxu0 0
  %1027 = vmatpush1.bf16.msra.mxu0 0
  %1028 = vmatprep.subr.bf16.mxu0 0
  %1029 = vmatpush1.bf16.msra.mxu0 0
  %1030 = vmatprep.subr.bf16.mxu0 0
  %1031 = vmatpush1.bf16.msra.mxu0 0
  %1032 = vmatprep.subr.bf16.mxu0 0
  %1033 = vmatpush1.bf16.msra.mxu0 0
  %1034 = vmatprep.subr.bf16.mxu0 0
  %1035 = vmatpush1.bf16.msra.mxu0 0
  %1036 = vmatprep.mubr.bf16.mxu0 %v958
  %1037 = vmatmul.mubr.bf16.gmra.mrb[0].mxu0 %v751
  %v1038 = vpop.f32.mrb[0].mxu0
  %v1039 = vadd.f32 %v999, %v1038
  %v1040 = vpop.f32.mrb[0].mxu0
  %v1041 = vpop.f32.mrb[0].mxu0
  %v1042 = vpop.f32.mrb[0].mxu0
  %1043 = vdwg.mxu0
  %v1044 = vld [vmem:[%s3] sm:$0x3]
  %v1045 = vmul.f32 %v1039, 0.5
  %v1046 = vmul.f32 %v1045, 1.442695
  %v1047 = vpow.pop %v1046
  %1049 = vrot.lane.b32.xlu0 %v1047, 120
  %v1050 = vpop.permute.xlu0 %1049
  %v1052 = vmul.f32 %v1044, %v1050
  %v1053 = vadd.f32 %v1039, %v1052
  %vm1054 = vcmask 123904
  %1055 = vst.msk [vmem:[%s17] sm:$0x3] %vm1054, %v1039
  %v1056 = vpack.c.bf16 %v1053, %v1053
  %v1057 = vld [vmem:[%s10] sm:$0xff]
  %v1058 = vld [vmem:[%s10 + $0x8] sm:$0xff]
  %v1059 = vld [vmem:[%s11] sm:$0xf]
  %v1061 = vlaneseq
  %v1062 = vshrl.u32 %v1061, 7
  %v1063 = vsub.s32 0, %v1062
  %v1064 = vrot.slane %v1059, %v1063
  %v1065 = vlaneseq
  %v1066 = vshrl.u32 %v1065, 7
  %v1067 = vsub.s32 1, %v1066
  %v1068 = vrot.slane %v1059, %v1067
  %v1069 = vlaneseq
  %v1070 = vshrl.u32 %v1069, 7
  %v1071 = vsub.s32 2, %v1070
  %v1072 = vrot.slane %v1059, %v1071
  %v1073 = vlaneseq
  %v1074 = vshrl.u32 %v1073, 7
  %v1075 = vsub.s32 3, %v1074
  %v1076 = vrot.slane %v1059, %v1075
  %v1083 = vunpack.c.l.b16 %v1057
  %v1084 = vunpack.c.h.b16 %v1057
  %v1085 = vunpack.c.l.b16 %v1058
  %v1086 = vunpack.c.h.b16 %v1058
  %v1087 = vpack.c.b16 %v1083, %v1083
  %v1088 = vpack.c.b16 %v1084, %v1084
  %v1089 = vpack.c.b16 %v1085, %v1085
  %v1090 = vpack.c.b16 %v1086, %v1086
  %v1092 = vsel %vm956, %v1056, 0
  %v1095 = vsel %vm960, %v1087, 0
  %v1098 = vsel %vm960, %v1088, 0
  %v1101 = vsel %vm960, %v1089, 0
  %v1104 = vsel %vm960, %v1090, 0
  %1106 = vmatprep.subr.bf16.mxu0 %v1098
  %1107 = vmatpush1.bf16.msra.mxu0 %v1095
  %1108 = vmatprep.subr.bf16.mxu0 0
  %1109 = vmatpush1.bf16.msra.mxu0 0
  %1110 = vmatprep.subr.bf16.mxu0 0
  %1111 = vmatpush1.bf16.msra.mxu0 0
  %1112 = vmatprep.subr.bf16.mxu0 0
  %1113 = vmatpush1.bf16.msra.mxu0 0
  %1114 = vmatprep.subr.bf16.mxu0 0
  %1115 = vmatpush1.bf16.msra.mxu0 0
  %1116 = vmatprep.subr.bf16.mxu0 0
  %1117 = vmatpush1.bf16.msra.mxu0 0
  %1118 = vmatprep.subr.bf16.mxu0 0
  %1119 = vmatpush1.bf16.msra.mxu0 0
  %1120 = vmatprep.subr.bf16.mxu0 0
  %1121 = vmatpush1.bf16.msra.mxu0 0
  %1122 = vmatprep.subr.bf16.mxu0 0
  %1123 = vmatpush1.bf16.msra.mxu0 0
  %1124 = vmatprep.subr.bf16.mxu0 0
  %1125 = vmatpush1.bf16.msra.mxu0 0
  %1126 = vmatprep.subr.bf16.mxu0 0
  %1127 = vmatpush1.bf16.msra.mxu0 0
  %1128 = vmatprep.subr.bf16.mxu0 0
  %1129 = vmatpush1.bf16.msra.mxu0 0
  %1130 = vmatprep.subr.bf16.mxu0 0
  %1131 = vmatpush1.bf16.msra.mxu0 0
  %1132 = vmatprep.subr.bf16.mxu0 0
  %1133 = vmatpush1.bf16.msra.mxu0 0
  %1134 = vmatprep.subr.bf16.mxu0 0
  %1135 = vmatpush1.bf16.msra.mxu0 0
  %1136 = vmatprep.subr.bf16.mxu0 0
  %1137 = vmatpush1.bf16.msra.mxu0 0
  %1138 = vmatprep.mubr.bf16.mxu0 0
  %1139 = vmatmul.mubr.bf16.gmra.mrb[0].mxu0 %v1092
  %v1140 = vpop.f32.mrb[0].mxu0
  %v1141 = vadd.f32 %v1064, %v1140
  %v1142 = vpop.f32.mrb[0].mxu0
  %v1143 = vadd.f32 %v1068, %v1142
  %v1144 = vpop.f32.mrb[0].mxu0
  %v1145 = vpop.f32.mrb[0].mxu0
  %1146 = vdwg.mxu0
  %1147 = vmatprep.subr.bf16.mxu0 %v1104
  %1148 = vmatpush1.bf16.msra.mxu0 %v1101
  %1149 = vmatprep.subr.bf16.mxu0 0
  %1150 = vmatpush1.bf16.msra.mxu0 0
  %1151 = vmatprep.subr.bf16.mxu0 0
  %1152 = vmatpush1.bf16.msra.mxu0 0
  %1153 = vmatprep.subr.bf16.mxu0 0
  %1154 = vmatpush1.bf16.msra.mxu0 0
  %1155 = vmatprep.subr.bf16.mxu0 0
  %1156 = vmatpush1.bf16.msra.mxu0 0
  %1157 = vmatprep.subr.bf16.mxu0 0
  %1158 = vmatpush1.bf16.msra.mxu0 0
  %1159 = vmatprep.subr.bf16.mxu0 0
  %1160 = vmatpush1.bf16.msra.mxu0 0
  %1161 = vmatprep.subr.bf16.mxu0 0
  %1162 = vmatpush1.bf16.msra.mxu0 0
  %1163 = vmatprep.subr.bf16.mxu0 0
  %1164 = vmatpush1.bf16.msra.mxu0 0
  %1165 = vmatprep.subr.bf16.mxu0 0
  %1166 = vmatpush1.bf16.msra.mxu0 0
  %1167 = vmatprep.subr.bf16.mxu0 0
  %1168 = vmatpush1.bf16.msra.mxu0 0
  %1169 = vmatprep.subr.bf16.mxu0 0
  %1170 = vmatpush1.bf16.msra.mxu0 0
  %1171 = vmatprep.subr.bf16.mxu0 0
  %1172 = vmatpush1.bf16.msra.mxu0 0
  %1173 = vmatprep.subr.bf16.mxu0 0
  %1174 = vmatpush1.bf16.msra.mxu0 0
  %1175 = vmatprep.subr.bf16.mxu0 0
  %1176 = vmatpush1.bf16.msra.mxu0 0
  %1177 = vmatprep.subr.bf16.mxu0 0
  %1178 = vmatpush1.bf16.msra.mxu0 0
  %1179 = vmatprep.mubr.bf16.mxu0 0
  %1180 = vmatmul.mubr.bf16.gmra.mrb[0].mxu0 %v1092
  %v1181 = vpop.f32.mrb[0].mxu0
  %v1182 = vadd.f32 %v1072, %v1181
  %v1183 = vpop.f32.mrb[0].mxu0
  %v1184 = vadd.f32 %v1076, %v1183
  %v1185 = vpop.f32.mrb[0].mxu0
  %v1186 = vpop.f32.mrb[0].mxu0
  %1187 = vdwg.mxu0
  %v1189 = vrot.slane %v1141, 7
  %v1191 = vrot.slane %v1141, 6
  %1192 = vrot.lane.b32.xlu0 %v1191, 72
  %v1193 = vpop.permute.xlu0 %1192
  %v1196 = vrot.slane %v1141, 5
  %v1197 = vrot.slane %v1143, 5
  %1198 = vrot.lane.b32.xlu0 %v1196, 16
  %v1199 = vpop.permute.xlu0 %1198
  %1200 = vrot.lane.b32.xlu0 %v1197, 16
  %v1201 = vpop.permute.xlu0 %1200
  %vm1202 = vcmask 130048
  %v1203 = vsel %vm1202, %v1199, %v1201
  %v1205 = vrot.slane %v1143, 4
  %1206 = vrot.lane.b32.xlu0 %v1205, 88
  %v1207 = vpop.permute.xlu0 %1206
  %v1210 = vrot.slane %v1143, 3
  %v1211 = vrot.slane %v1182, 3
  %1212 = vrot.lane.b32.xlu0 %v1210, 32
  %v1213 = vpop.permute.xlu0 %1212
  %1214 = vrot.lane.b32.xlu0 %v1211, 32
  %v1215 = vpop.permute.xlu0 %1214
  %vm1216 = vcmask 261120
  %v1217 = vsel %vm1216, %v1213, %v1215
  %v1219 = vrot.slane %v1182, 2
  %1220 = vrot.lane.b32.xlu0 %v1219, 104
  %v1221 = vpop.permute.xlu0 %1220
  %v1224 = vrot.slane %v1182, 1
  %v1225 = vrot.slane %v1184, 1
  %1226 = vrot.lane.b32.xlu0 %v1224, 48
  %v1227 = vpop.permute.xlu0 %1226
  %1228 = vrot.lane.b32.xlu0 %v1225, 48
  %v1229 = vpop.permute.xlu0 %1228
  %vm1230 = vcmask 392192
  %v1231 = vsel %vm1230, %v1227, %v1229
  %v1233 = vsel %vm414, 0.0, %v1189
  %v1234 = vsel %vm425, %v1233, %v1193
  %vm1235 = vcmask 1042432
  %v1236 = vsel %vm1235, %v1234, %v1203
  %v1237 = vsel %vm960, %v1236, %v1207
  %vm1238 = vcmask 1044480
  %v1239 = vsel %vm1238, %v1237, %v1217
  %v1240 = vsel %vm109, %v1239, %v1221
  %v1241 = vsel %vm409, %v1240, %v1231
  %1242 = vrot.lane.b32.xlu0 %v1189, 72
  %v1243 = vpop.permute.xlu0 %1242
  %v1245 = vrot.slane %v1143, 6
  %1246 = vrot.lane.b32.xlu0 %v1191, 16
  %v1247 = vpop.permute.xlu0 %1246
  %1248 = vrot.lane.b32.xlu0 %v1245, 16
  %v1249 = vpop.permute.xlu0 %1248
  %v1250 = vsel %vm1202, %v1247, %v1249
  %1252 = vrot.lane.b32.xlu0 %v1197, 88
  %v1253 = vpop.permute.xlu0 %1252
  %v1255 = vrot.slane %v1182, 4
  %1256 = vrot.lane.b32.xlu0 %v1205, 32
  %v1257 = vpop.permute.xlu0 %1256
  %1258 = vrot.lane.b32.xlu0 %v1255, 32
  %v1259 = vpop.permute.xlu0 %1258
  %v1260 = vsel %vm1216, %v1257, %v1259
  %1262 = vrot.lane.b32.xlu0 %v1211, 104
  %v1263 = vpop.permute.xlu0 %1262
  %v1265 = vrot.slane %v1184, 2
  %1266 = vrot.lane.b32.xlu0 %v1219, 48
  %v1267 = vpop.permute.xlu0 %1266
  %1268 = vrot.lane.b32.xlu0 %v1265, 48
  %v1269 = vpop.permute.xlu0 %1268
  %v1270 = vsel %vm1230, %v1267, %v1269
  %v1272 = vsel %vm414, 0.0, %v1141
  %v1273 = vsel %vm425, %v1272, %v1243
  %v1274 = vsel %vm1235, %v1273, %v1250
  %v1275 = vsel %vm960, %v1274, %v1253
  %v1276 = vsel %vm1238, %v1275, %v1260
  %v1277 = vsel %vm109, %v1276, %v1263
  %v1278 = vsel %vm409, %v1277, %v1270
  %v1280 = vrot.slane %v1278, 1
  %v1282 = vsel %vm409, %v1241, %v1280
  %v1283 = vpack.c.bf16 %v1280, %v1282
  %v1285 = vrot.slane %v1241, 1
  %v1287 = vrot.slane %v1278, 2
  %v1289 = vsel %vm409, %v1285, %v1287
  %v1290 = vpack.c.bf16 %v1287, %v1289
  %v1292 = vrot.slane %v1241, 2
  %v1293 = vrot.slane 0.0, 2
  %v1294 = vsel %vm109, %v1292, %v1293
  %v1296 = vrot.slane %v1278, 3
  %v1297 = vrot.slane 0.0, 3
  %v1298 = vsel %vm1238, %v1296, %v1297
  %v1301 = vsel %vm409, %v1294, %v1296
  %v1302 = vpack.c.bf16 %v1298, %v1301
  %s1303 = scalar_lea.vmem %s12, 84
  %v1304 = vld [vmem:[%s1303] sm:$0xf]
  %v1305 = vld [vmem:[%s1303 + $0x4] sm:$0xf]
  %v1306 = vld [vmem:[%s1303 + $0x8] sm:$0xf]
  %v1307 = vld [vmem:[%s1303 + $0xc] sm:$0xf]
  %v1308 = vld [vmem:[%s1303 + $0x10] sm:$0xf]
  %v1309 = vld [vmem:[%s1303 + $0x14] sm:$0xf]
  %v1310 = vld [vmem:[%s1303 + $0x18] sm:$0xf]
  %s1311 = scalar_lea.vmem %s12, 28
  %v1312 = vld [vmem:[%s1311] sm:$0xf]
  %v1313 = vld [vmem:[%s1311 + $0x4] sm:$0xf]
  %v1314 = vld [vmem:[%s1311 + $0x8] sm:$0xf]
  %v1315 = vld [vmem:[%s1311 + $0xc] sm:$0xf]
  %v1316 = vld [vmem:[%s1311 + $0x10] sm:$0xf]
  %v1317 = vld [vmem:[%s1311 + $0x14] sm:$0xf]
  %v1318 = vld [vmem:[%s1311 + $0x18] sm:$0xf]
  %v1326 = vunpack.c.l.b16 %v1312
  %v1327 = vunpack.c.l.b16 %v1313
  %v1328 = vunpack.c.l.b16 %v1314
  %v1329 = vunpack.c.l.b16 %v1315
  %v1330 = vunpack.c.l.b16 %v1316
  %v1331 = vunpack.c.l.b16 %v1317
  %v1332 = vunpack.c.l.b16 %v1318
  %v1333 = vpack.c.b16 %v1327, %v1326
  %v1334 = vpack.c.b16 %v1329, %v1328
  %v1335 = vpack.c.b16 %v1331, %v1330
  %v1336 = vpack.c.b16 %v1332, %v1332
  %v1341 = vsel %vm691, %v1290, 0
  %v1344 = vsel %vm960, %v1336, 0
  %1346 = vmatprep.subr.bf16.mxu0 0
  %1347 = vmatpush1.bf16.msra.mxu0 %v1333
  %1348 = vmatprep.subr.bf16.mxu0 0
  %1349 = vmatpush1.bf16.msra.mxu0 %v1334
  %1350 = vmatprep.subr.bf16.mxu0 0
  %1351 = vmatpush1.bf16.msra.mxu0 %v1335
  %1352 = vmatprep.subr.bf16.mxu0 0
  %1353 = vmatpush1.bf16.msra.mxu0 %v1344
  %1354 = vmatprep.subr.bf16.mxu0 0
  %1355 = vmatpush1.bf16.msra.mxu0 0
  %1356 = vmatprep.subr.bf16.mxu0 0
  %1357 = vmatpush1.bf16.msra.mxu0 0
  %1358 = vmatprep.subr.bf16.mxu0 0
  %1359 = vmatpush1.bf16.msra.mxu0 0
  %1360 = vmatprep.subr.bf16.mxu0 0
  %1361 = vmatpush1.bf16.msra.mxu0 0
  %1362 = vmatprep.subr.bf16.mxu0 0
  %1363 = vmatpush1.bf16.msra.mxu0 0
  %1364 = vmatprep.subr.bf16.mxu0 0
  %1365 = vmatpush1.bf16.msra.mxu0 0
  %1366 = vmatprep.subr.bf16.mxu0 0
  %1367 = vmatpush1.bf16.msra.mxu0 0
  %1368 = vmatprep.subr.bf16.mxu0 0
  %1369 = vmatpush1.bf16.msra.mxu0 0
  %1370 = vmatprep.subr.bf16.mxu0 0
  %1371 = vmatpush1.bf16.msra.mxu0 0
  %1372 = vmatprep.subr.bf16.mxu0 0
  %1373 = vmatpush1.bf16.msra.mxu0 0
  %1374 = vmatprep.subr.bf16.mxu0 0
  %1375 = vmatpush1.bf16.msra.mxu0 0
  %1376 = vmatprep.subr.bf16.mxu0 0
  %1377 = vmatpush1.bf16.msra.mxu0 0
  %1378 = vmatprep.mubr.bf16.mxu0 0
  %1379 = vmatmul.mubr.bf16.gmra.mrb[0].mxu0 %v1341
  %v1380 = vpop.f32.mrb[0].mxu0
  %v1381 = vadd.f32 0.0, %v1380
  %v1382 = vpop.f32.mrb[0].mxu0
  %v1383 = vpop.f32.mrb[0].mxu0
  %v1384 = vadd.f32 0.0, %v1383
  %v1385 = vpop.f32.mrb[0].mxu0
  %1386 = vdwg.mxu0
  %v1394 = vunpack.c.l.b16 %v1304
  %v1395 = vunpack.c.l.b16 %v1305
  %v1396 = vunpack.c.l.b16 %v1306
  %v1397 = vunpack.c.l.b16 %v1307
  %v1398 = vunpack.c.l.b16 %v1308
  %v1399 = vunpack.c.l.b16 %v1309
  %v1400 = vunpack.c.l.b16 %v1310
  %v1401 = vpack.c.b16 %v1395, %v1394
  %v1402 = vpack.c.b16 %v1397, %v1396
  %v1403 = vpack.c.b16 %v1399, %v1398
  %v1404 = vpack.c.b16 %v1400, %v1400
  %v1409 = vsel %vm691, %v1283, 0
  %v1412 = vsel %vm960, %v1404, 0
  %1414 = vmatprep.subr.bf16.mxu0 0
  %1415 = vmatpush1.bf16.msra.mxu0 %v1401
  %1416 = vmatprep.subr.bf16.mxu0 0
  %1417 = vmatpush1.bf16.msra.mxu0 %v1402
  %1418 = vmatprep.subr.bf16.mxu0 0
  %1419 = vmatpush1.bf16.msra.mxu0 %v1403
  %1420 = vmatprep.subr.bf16.mxu0 0
  %1421 = vmatpush1.bf16.msra.mxu0 %v1412
  %1422 = vmatprep.subr.bf16.mxu0 0
  %1423 = vmatpush1.bf16.msra.mxu0 0
  %1424 = vmatprep.subr.bf16.mxu0 0
  %1425 = vmatpush1.bf16.msra.mxu0 0
  %1426 = vmatprep.subr.bf16.mxu0 0
  %1427 = vmatpush1.bf16.msra.mxu0 0
  %1428 = vmatprep.subr.bf16.mxu0 0
  %1429 = vmatpush1.bf16.msra.mxu0 0
  %1430 = vmatprep.subr.bf16.mxu0 0
  %1431 = vmatpush1.bf16.msra.mxu0 0
  %1432 = vmatprep.subr.bf16.mxu0 0
  %1433 = vmatpush1.bf16.msra.mxu0 0
  %1434 = vmatprep.subr.bf16.mxu0 0
  %1435 = vmatpush1.bf16.msra.mxu0 0
  %1436 = vmatprep.subr.bf16.mxu0 0
  %1437 = vmatpush1.bf16.msra.mxu0 0
  %1438 = vmatprep.subr.bf16.mxu0 0
  %1439 = vmatpush1.bf16.msra.mxu0 0
  %1440 = vmatprep.subr.bf16.mxu0 0
  %1441 = vmatpush1.bf16.msra.mxu0 0
  %1442 = vmatprep.subr.bf16.mxu0 0
  %1443 = vmatpush1.bf16.msra.mxu0 0
  %1444 = vmatprep.subr.bf16.mxu0 0
  %1445 = vmatpush1.bf16.msra.mxu0 0
  %1446 = vmatprep.mubr.bf16.mxu0 0
  %1447 = vmatmul.mubr.bf16.gmra.mrb[0].mxu0 %v1409
  %v1448 = vpop.f32.mrb[0].mxu0
  %v1449 = vadd.f32 %v1381, %v1448
  %v1450 = vpop.f32.mrb[0].mxu0
  %v1451 = vpop.f32.mrb[0].mxu0
  %v1452 = vadd.f32 %v1384, %v1451
  %v1453 = vpop.f32.mrb[0].mxu0
  %1454 = vdwg.mxu0
  %v1455 = vld [vmem:[%s13] sm:$0x1]
  %v1457 = vlaneseq
  %v1458 = vshrl.u32 %v1457, 7
  %v1459 = vsub.s32 0, %v1458
  %v1460 = vrot.slane %v1455, %v1459
  %v1462 = vadd.f32 %v1449, %v1460
  %v1463 = vadd.f32 %v1452, %v1460
  %v1464 = vmax.f32 %v1462, 0.0
  %v1465 = vmax.f32 %v1463, 0.0
  %s1466 = scalar_lea.vmem %s12, 56
  %v1467 = vld [vmem:[%s1466] sm:$0xf]
  %v1468 = vld [vmem:[%s1466 + $0x4] sm:$0xf]
  %v1469 = vld [vmem:[%s1466 + $0x8] sm:$0xf]
  %v1470 = vld [vmem:[%s1466 + $0xc] sm:$0xf]
  %v1471 = vld [vmem:[%s1466 + $0x10] sm:$0xf]
  %v1472 = vld [vmem:[%s1466 + $0x14] sm:$0xf]
  %v1473 = vld [vmem:[%s1466 + $0x18] sm:$0xf]
  %v1474 = vld [vmem:[%s12] sm:$0xf]
  %v1475 = vld [vmem:[%s12 + $0x4] sm:$0xf]
  %v1476 = vld [vmem:[%s12 + $0x8] sm:$0xf]
  %v1477 = vld [vmem:[%s12 + $0xc] sm:$0xf]
  %v1478 = vld [vmem:[%s12 + $0x10] sm:$0xf]
  %v1479 = vld [vmem:[%s12 + $0x14] sm:$0xf]
  %v1480 = vld [vmem:[%s12 + $0x18] sm:$0xf]
  %v1488 = vunpack.c.l.b16 %v1474
  %v1489 = vunpack.c.l.b16 %v1475
  %v1490 = vunpack.c.l.b16 %v1476
  %v1491 = vunpack.c.l.b16 %v1477
  %v1492 = vunpack.c.l.b16 %v1478
  %v1493 = vunpack.c.l.b16 %v1479
  %v1494 = vunpack.c.l.b16 %v1480
  %v1495 = vpack.c.b16 %v1489, %v1488
  %v1496 = vpack.c.b16 %v1491, %v1490
  %v1497 = vpack.c.b16 %v1493, %v1492
  %v1498 = vpack.c.b16 %v1494, %v1494
  %v1503 = vsel %vm691, %v1302, 0
  %v1506 = vsel %vm960, %v1498, 0
  %1508 = vmatprep.subr.bf16.mxu0 0
  %1509 = vmatpush1.bf16.msra.mxu0 %v1495
  %1510 = vmatprep.subr.bf16.mxu0 0
  %1511 = vmatpush1.bf16.msra.mxu0 %v1496
  %1512 = vmatprep.subr.bf16.mxu0 0
  %1513 = vmatpush1.bf16.msra.mxu0 %v1497
  %1514 = vmatprep.subr.bf16.mxu0 0
  %1515 = vmatpush1.bf16.msra.mxu0 %v1506
  %1516 = vmatprep.subr.bf16.mxu0 0
  %1517 = vmatpush1.bf16.msra.mxu0 0
  %1518 = vmatprep.subr.bf16.mxu0 0
  %1519 = vmatpush1.bf16.msra.mxu0 0
  %1520 = vmatprep.subr.bf16.mxu0 0
  %1521 = vmatpush1.bf16.msra.mxu0 0
  %1522 = vmatprep.subr.bf16.mxu0 0
  %1523 = vmatpush1.bf16.msra.mxu0 0
  %1524 = vmatprep.subr.bf16.mxu0 0
  %1525 = vmatpush1.bf16.msra.mxu0 0
  %1526 = vmatprep.subr.bf16.mxu0 0
  %1527 = vmatpush1.bf16.msra.mxu0 0
  %1528 = vmatprep.subr.bf16.mxu0 0
  %1529 = vmatpush1.bf16.msra.mxu0 0
  %1530 = vmatprep.subr.bf16.mxu0 0
  %1531 = vmatpush1.bf16.msra.mxu0 0
  %1532 = vmatprep.subr.bf16.mxu0 0
  %1533 = vmatpush1.bf16.msra.mxu0 0
  %1534 = vmatprep.subr.bf16.mxu0 0
  %1535 = vmatpush1.bf16.msra.mxu0 0
  %1536 = vmatprep.subr.bf16.mxu0 0
  %1537 = vmatpush1.bf16.msra.mxu0 0
  %1538 = vmatprep.subr.bf16.mxu0 0
  %1539 = vmatpush1.bf16.msra.mxu0 0
  %1540 = vmatprep.mubr.bf16.mxu0 0
  %1541 = vmatmul.mubr.bf16.gmra.mrb[0].mxu0 %v1503
  %v1542 = vpop.f32.mrb[0].mxu0
  %v1543 = vadd.f32 0.0, %v1542
  %v1544 = vpop.f32.mrb[0].mxu0
  %v1545 = vpop.f32.mrb[0].mxu0
  %v1546 = vadd.f32 0.0, %v1545
  %v1547 = vpop.f32.mrb[0].mxu0
  %1548 = vdwg.mxu0
  %v1556 = vunpack.c.l.b16 %v1467
  %v1557 = vunpack.c.l.b16 %v1468
  %v1558 = vunpack.c.l.b16 %v1469
  %v1559 = vunpack.c.l.b16 %v1470
  %v1560 = vunpack.c.l.b16 %v1471
  %v1561 = vunpack.c.l.b16 %v1472
  %v1562 = vunpack.c.l.b16 %v1473
  %v1563 = vpack.c.b16 %v1557, %v1556
  %v1564 = vpack.c.b16 %v1559, %v1558
  %v1565 = vpack.c.b16 %v1561, %v1560
  %v1566 = vpack.c.b16 %v1562, %v1562
  %v1571 = vsel %vm960, %v1566, 0
  %1573 = vmatprep.subr.bf16.mxu0 0
  %1574 = vmatpush1.bf16.msra.mxu0 %v1563
  %1575 = vmatprep.subr.bf16.mxu0 0
  %1576 = vmatpush1.bf16.msra.mxu0 %v1564
  %1577 = vmatprep.subr.bf16.mxu0 0
  %1578 = vmatpush1.bf16.msra.mxu0 %v1565
  %1579 = vmatprep.subr.bf16.mxu0 0
  %1580 = vmatpush1.bf16.msra.mxu0 %v1571
  %1581 = vmatprep.subr.bf16.mxu0 0
  %1582 = vmatpush1.bf16.msra.mxu0 0
  %1583 = vmatprep.subr.bf16.mxu0 0
  %1584 = vmatpush1.bf16.msra.mxu0 0
  %1585 = vmatprep.subr.bf16.mxu0 0
  %1586 = vmatpush1.bf16.msra.mxu0 0
  %1587 = vmatprep.subr.bf16.mxu0 0
  %1588 = vmatpush1.bf16.msra.mxu0 0
  %1589 = vmatprep.subr.bf16.mxu0 0
  %1590 = vmatpush1.bf16.msra.mxu0 0
  %1591 = vmatprep.subr.bf16.mxu0 0
  %1592 = vmatpush1.bf16.msra.mxu0 0
  %1593 = vmatprep.subr.bf16.mxu0 0
  %1594 = vmatpush1.bf16.msra.mxu0 0
  %1595 = vmatprep.subr.bf16.mxu0 0
  %1596 = vmatpush1.bf16.msra.mxu0 0
  %1597 = vmatprep.subr.bf16.mxu0 0
  %1598 = vmatpush1.bf16.msra.mxu0 0
  %1599 = vmatprep.subr.bf16.mxu0 0
  %1600 = vmatpush1.bf16.msra.mxu0 0
  %1601 = vmatprep.subr.bf16.mxu0 0
  %1602 = vmatpush1.bf16.msra.mxu0 0
  %1603 = vmatprep.subr.bf16.mxu0 0
  %1604 = vmatpush1.bf16.msra.mxu0 0
  %1605 = vmatprep.mubr.bf16.mxu0 0
  %1606 = vmatmul.mubr.bf16.gmra.mrb[0].mxu0 %v1341
  %v1607 = vpop.f32.mrb[0].mxu0
  %v1608 = vadd.f32 %v1543, %v1607
  %v1609 = vpop.f32.mrb[0].mxu0
  %v1610 = vpop.f32.mrb[0].mxu0
  %v1611 = vadd.f32 %v1546, %v1610
  %v1612 = vpop.f32.mrb[0].mxu0
  %1613 = vdwg.mxu0
  %v1614 = vadd.f32 %v1608, %v1460
  %v1615 = vadd.f32 %v1611, %v1460
  %v1616 = vmax.f32 %v1614, 0.0
  %v1617 = vmax.f32 %v1615, 0.0
  %v1619 = vrot.slane %v1616, 7
  %v1621 = vsel %vm414, 0.0, %v1619
  %v1623 = vrot.slane %v1616, 6
  %v1624 = vrot.slane %v1617, 6
  %v1625 = vsel %vm425, %v1623, %v1624
  %v1627 = vsel %vm414, 0.0, %v1625
  %v1629 = vrot.slane %v1627, 1
  %v1631 = vsel %vm409, %v1621, %v1629
  %v1632 = vpack.c.bf16 %v1629, %v1631
  %v1634 = vrot.slane %v1464, 1
  %v1636 = vsel %vm109, %v1634, 0.0
  %v1637 = vsel %vm109, %v1465, 0.0
  %v1639 = vrot.slane %v1637, 1
  %v1641 = vsel %vm409, %v1636, %v1639
  %v1642 = vpack.c.bf16 %v1639, %v1641
  %v1643 = vpack.c.bf16 %v1465, %v1464
  %v1644 = vpack.c.bf16 %v1617, %v1616
  %s1645 = scalar_lea.vmem %s14, 84
  %v1646 = vld [vmem:[%s1645] sm:$0xf]
  %v1647 = vld [vmem:[%s1645 + $0x4] sm:$0xf]
  %v1648 = vld [vmem:[%s1645 + $0x8] sm:$0xf]
  %v1649 = vld [vmem:[%s1645 + $0xc] sm:$0xf]
  %v1650 = vld [vmem:[%s1645 + $0x10] sm:$0xf]
  %v1651 = vld [vmem:[%s1645 + $0x14] sm:$0xf]
  %v1652 = vld [vmem:[%s1645 + $0x18] sm:$0xf]
  %s1653 = scalar_lea.vmem %s14, 28
  %v1654 = vld [vmem:[%s1653] sm:$0xf]
  %v1655 = vld [vmem:[%s1653 + $0x4] sm:$0xf]
  %v1656 = vld [vmem:[%s1653 + $0x8] sm:$0xf]
  %v1657 = vld [vmem:[%s1653 + $0xc] sm:$0xf]
  %v1658 = vld [vmem:[%s1653 + $0x10] sm:$0xf]
  %v1659 = vld [vmem:[%s1653 + $0x14] sm:$0xf]
  %v1660 = vld [vmem:[%s1653 + $0x18] sm:$0xf]
  %v1668 = vunpack.c.l.b16 %v1654
  %v1669 = vunpack.c.l.b16 %v1655
  %v1670 = vunpack.c.l.b16 %v1656
  %v1671 = vunpack.c.l.b16 %v1657
  %v1672 = vunpack.c.l.b16 %v1658
  %v1673 = vunpack.c.l.b16 %v1659
  %v1674 = vunpack.c.l.b16 %v1660
  %v1675 = vpack.c.b16 %v1669, %v1668
  %v1676 = vpack.c.b16 %v1671, %v1670
  %v1677 = vpack.c.b16 %v1673, %v1672
  %v1678 = vpack.c.b16 %v1674, %v1674
  %v1683 = vsel %vm691, %v1643, 0
  %v1686 = vsel %vm960, %v1678, 0
  %1688 = vmatprep.subr.bf16.mxu0 0
  %1689 = vmatpush1.bf16.msra.mxu0 %v1675
  %1690 = vmatprep.subr.bf16.mxu0 0
  %1691 = vmatpush1.bf16.msra.mxu0 %v1676
  %1692 = vmatprep.subr.bf16.mxu0 0
  %1693 = vmatpush1.bf16.msra.mxu0 %v1677
  %1694 = vmatprep.subr.bf16.mxu0 0
  %1695 = vmatpush1.bf16.msra.mxu0 %v1686
  %1696 = vmatprep.subr.bf16.mxu0 0
  %1697 = vmatpush1.bf16.msra.mxu0 0
  %1698 = vmatprep.subr.bf16.mxu0 0
  %1699 = vmatpush1.bf16.msra.mxu0 0
  %1700 = vmatprep.subr.bf16.mxu0 0
  %1701 = vmatpush1.bf16.msra.mxu0 0
  %1702 = vmatprep.subr.bf16.mxu0 0
  %1703 = vmatpush1.bf16.msra.mxu0 0
  %1704 = vmatprep.subr.bf16.mxu0 0
  %1705 = vmatpush1.bf16.msra.mxu0 0
  %1706 = vmatprep.subr.bf16.mxu0 0
  %1707 = vmatpush1.bf16.msra.mxu0 0
  %1708 = vmatprep.subr.bf16.mxu0 0
  %1709 = vmatpush1.bf16.msra.mxu0 0
  %1710 = vmatprep.subr.bf16.mxu0 0
  %1711 = vmatpush1.bf16.msra.mxu0 0
  %1712 = vmatprep.subr.bf16.mxu0 0
  %1713 = vmatpush1.bf16.msra.mxu0 0
  %1714 = vmatprep.subr.bf16.mxu0 0
  %1715 = vmatpush1.bf16.msra.mxu0 0
  %1716 = vmatprep.subr.bf16.mxu0 0
  %1717 = vmatpush1.bf16.msra.mxu0 0
  %1718 = vmatprep.subr.bf16.mxu0 0
  %1719 = vmatpush1.bf16.msra.mxu0 0
  %1720 = vmatprep.mubr.bf16.mxu0 0
  %1721 = vmatmul.mubr.bf16.gmra.mrb[0].mxu0 %v1683
  %v1722 = vpop.f32.mrb[0].mxu0
  %v1723 = vadd.f32 0.0, %v1722
  %v1724 = vpop.f32.mrb[0].mxu0
  %v1725 = vpop.f32.mrb[0].mxu0
  %v1726 = vadd.f32 0.0, %v1725
  %v1727 = vpop.f32.mrb[0].mxu0
  %1728 = vdwg.mxu0
  %v1736 = vunpack.c.l.b16 %v1646
  %v1737 = vunpack.c.l.b16 %v1647
  %v1738 = vunpack.c.l.b16 %v1648
  %v1739 = vunpack.c.l.b16 %v1649
  %v1740 = vunpack.c.l.b16 %v1650
  %v1741 = vunpack.c.l.b16 %v1651
  %v1742 = vunpack.c.l.b16 %v1652
  %v1743 = vpack.c.b16 %v1737, %v1736
  %v1744 = vpack.c.b16 %v1739, %v1738
  %v1745 = vpack.c.b16 %v1741, %v1740
  %v1746 = vpack.c.b16 %v1742, %v1742
  %v1751 = vsel %vm691, %v1632, 0
  %v1754 = vsel %vm960, %v1746, 0
  %1756 = vmatprep.subr.bf16.mxu0 0
  %1757 = vmatpush1.bf16.msra.mxu0 %v1743
  %1758 = vmatprep.subr.bf16.mxu0 0
  %1759 = vmatpush1.bf16.msra.mxu0 %v1744
  %1760 = vmatprep.subr.bf16.mxu0 0
  %1761 = vmatpush1.bf16.msra.mxu0 %v1745
  %1762 = vmatprep.subr.bf16.mxu0 0
  %1763 = vmatpush1.bf16.msra.mxu0 %v1754
  %1764 = vmatprep.subr.bf16.mxu0 0
  %1765 = vmatpush1.bf16.msra.mxu0 0
  %1766 = vmatprep.subr.bf16.mxu0 0
  %1767 = vmatpush1.bf16.msra.mxu0 0
  %1768 = vmatprep.subr.bf16.mxu0 0
  %1769 = vmatpush1.bf16.msra.mxu0 0
  %1770 = vmatprep.subr.bf16.mxu0 0
  %1771 = vmatpush1.bf16.msra.mxu0 0
  %1772 = vmatprep.subr.bf16.mxu0 0
  %1773 = vmatpush1.bf16.msra.mxu0 0
  %1774 = vmatprep.subr.bf16.mxu0 0
  %1775 = vmatpush1.bf16.msra.mxu0 0
  %1776 = vmatprep.subr.bf16.mxu0 0
  %1777 = vmatpush1.bf16.msra.mxu0 0
  %1778 = vmatprep.subr.bf16.mxu0 0
  %1779 = vmatpush1.bf16.msra.mxu0 0
  %1780 = vmatprep.subr.bf16.mxu0 0
  %1781 = vmatpush1.bf16.msra.mxu0 0
  %1782 = vmatprep.subr.bf16.mxu0 0
  %1783 = vmatpush1.bf16.msra.mxu0 0
  %1784 = vmatprep.subr.bf16.mxu0 0
  %1785 = vmatpush1.bf16.msra.mxu0 0
  %1786 = vmatprep.subr.bf16.mxu0 0
  %1787 = vmatpush1.bf16.msra.mxu0 0
  %1788 = vmatprep.mubr.bf16.mxu0 0
  %1789 = vmatmul.mubr.bf16.gmra.mrb[0].mxu0 %v1751
  %v1790 = vpop.f32.mrb[0].mxu0
  %v1791 = vadd.f32 %v1723, %v1790
  %v1792 = vpop.f32.mrb[0].mxu0
  %v1793 = vpop.f32.mrb[0].mxu0
  %v1794 = vadd.f32 %v1726, %v1793
  %v1795 = vpop.f32.mrb[0].mxu0
  %1796 = vdwg.mxu0
  %s1797 = scalar_lea.vmem %s14, 56
  %v1798 = vld [vmem:[%s1797] sm:$0xf]
  %v1799 = vld [vmem:[%s1797 + $0x4] sm:$0xf]
  %v1800 = vld [vmem:[%s1797 + $0x8] sm:$0xf]
  %v1801 = vld [vmem:[%s1797 + $0xc] sm:$0xf]
  %v1802 = vld [vmem:[%s1797 + $0x10] sm:$0xf]
  %v1803 = vld [vmem:[%s1797 + $0x14] sm:$0xf]
  %v1804 = vld [vmem:[%s1797 + $0x18] sm:$0xf]
  %v1805 = vld [vmem:[%s14] sm:$0xf]
  %v1806 = vld [vmem:[%s14 + $0x4] sm:$0xf]
  %v1807 = vld [vmem:[%s14 + $0x8] sm:$0xf]
  %v1808 = vld [vmem:[%s14 + $0xc] sm:$0xf]
  %v1809 = vld [vmem:[%s14 + $0x10] sm:$0xf]
  %v1810 = vld [vmem:[%s14 + $0x14] sm:$0xf]
  %v1811 = vld [vmem:[%s14 + $0x18] sm:$0xf]
  %v1819 = vunpack.c.l.b16 %v1805
  %v1820 = vunpack.c.l.b16 %v1806
  %v1821 = vunpack.c.l.b16 %v1807
  %v1822 = vunpack.c.l.b16 %v1808
  %v1823 = vunpack.c.l.b16 %v1809
  %v1824 = vunpack.c.l.b16 %v1810
  %v1825 = vunpack.c.l.b16 %v1811
  %v1826 = vpack.c.b16 %v1820, %v1819
  %v1827 = vpack.c.b16 %v1822, %v1821
  %v1828 = vpack.c.b16 %v1824, %v1823
  %v1829 = vpack.c.b16 %v1825, %v1825
  %v1834 = vsel %vm691, %v1644, 0
  %v1837 = vsel %vm960, %v1829, 0
  %1839 = vmatprep.subr.bf16.mxu0 0
  %1840 = vmatpush1.bf16.msra.mxu0 %v1826
  %1841 = vmatprep.subr.bf16.mxu0 0
  %1842 = vmatpush1.bf16.msra.mxu0 %v1827
  %1843 = vmatprep.subr.bf16.mxu0 0
  %1844 = vmatpush1.bf16.msra.mxu0 %v1828
  %1845 = vmatprep.subr.bf16.mxu0 0
  %1846 = vmatpush1.bf16.msra.mxu0 %v1837
  %1847 = vmatprep.subr.bf16.mxu0 0
  %1848 = vmatpush1.bf16.msra.mxu0 0
  %1849 = vmatprep.subr.bf16.mxu0 0
  %1850 = vmatpush1.bf16.msra.mxu0 0
  %1851 = vmatprep.subr.bf16.mxu0 0
  %1852 = vmatpush1.bf16.msra.mxu0 0
  %1853 = vmatprep.subr.bf16.mxu0 0
  %1854 = vmatpush1.bf16.msra.mxu0 0
  %1855 = vmatprep.subr.bf16.mxu0 0
  %1856 = vmatpush1.bf16.msra.mxu0 0
  %1857 = vmatprep.subr.bf16.mxu0 0
  %1858 = vmatpush1.bf16.msra.mxu0 0
  %1859 = vmatprep.subr.bf16.mxu0 0
  %1860 = vmatpush1.bf16.msra.mxu0 0
  %1861 = vmatprep.subr.bf16.mxu0 0
  %1862 = vmatpush1.bf16.msra.mxu0 0
  %1863 = vmatprep.subr.bf16.mxu0 0
  %1864 = vmatpush1.bf16.msra.mxu0 0
  %1865 = vmatprep.subr.bf16.mxu0 0
  %1866 = vmatpush1.bf16.msra.mxu0 0
  %1867 = vmatprep.subr.bf16.mxu0 0
  %1868 = vmatpush1.bf16.msra.mxu0 0
  %1869 = vmatprep.subr.bf16.mxu0 0
  %1870 = vmatpush1.bf16.msra.mxu0 0
  %1871 = vmatprep.mubr.bf16.mxu0 0
  %1872 = vmatmul.mubr.bf16.gmra.mrb[0].mxu0 %v1834
  %v1873 = vpop.f32.mrb[0].mxu0
  %v1874 = vadd.f32 0.0, %v1873
  %v1875 = vpop.f32.mrb[0].mxu0
  %v1876 = vpop.f32.mrb[0].mxu0
  %v1877 = vadd.f32 0.0, %v1876
  %v1878 = vpop.f32.mrb[0].mxu0
  %1879 = vdwg.mxu0
  %v1887 = vunpack.c.l.b16 %v1798
  %v1888 = vunpack.c.l.b16 %v1799
  %v1889 = vunpack.c.l.b16 %v1800
  %v1890 = vunpack.c.l.b16 %v1801
  %v1891 = vunpack.c.l.b16 %v1802
  %v1892 = vunpack.c.l.b16 %v1803
  %v1893 = vunpack.c.l.b16 %v1804
  %v1894 = vpack.c.b16 %v1888, %v1887
  %v1895 = vpack.c.b16 %v1890, %v1889
  %v1896 = vpack.c.b16 %v1892, %v1891
  %v1897 = vpack.c.b16 %v1893, %v1893
  %v1902 = vsel %vm960, %v1897, 0
  %1904 = vmatprep.subr.bf16.mxu0 0
  %1905 = vmatpush1.bf16.msra.mxu0 %v1894
  %1906 = vmatprep.subr.bf16.mxu0 0
  %1907 = vmatpush1.bf16.msra.mxu0 %v1895
  %1908 = vmatprep.subr.bf16.mxu0 0
  %1909 = vmatpush1.bf16.msra.mxu0 %v1896
  %1910 = vmatprep.subr.bf16.mxu0 0
  %1911 = vmatpush1.bf16.msra.mxu0 %v1902
  %1912 = vmatprep.subr.bf16.mxu0 0
  %1913 = vmatpush1.bf16.msra.mxu0 0
  %1914 = vmatprep.subr.bf16.mxu0 0
  %1915 = vmatpush1.bf16.msra.mxu0 0
  %1916 = vmatprep.subr.bf16.mxu0 0
  %1917 = vmatpush1.bf16.msra.mxu0 0
  %1918 = vmatprep.subr.bf16.mxu0 0
  %1919 = vmatpush1.bf16.msra.mxu0 0
  %1920 = vmatprep.subr.bf16.mxu0 0
  %1921 = vmatpush1.bf16.msra.mxu0 0
  %1922 = vmatprep.subr.bf16.mxu0 0
  %1923 = vmatpush1.bf16.msra.mxu0 0
  %1924 = vmatprep.subr.bf16.mxu0 0
  %1925 = vmatpush1.bf16.msra.mxu0 0
  %1926 = vmatprep.subr.bf16.mxu0 0
  %1927 = vmatpush1.bf16.msra.mxu0 0
  %1928 = vmatprep.subr.bf16.mxu0 0
  %1929 = vmatpush1.bf16.msra.mxu0 0
  %1930 = vmatprep.subr.bf16.mxu0 0
  %1931 = vmatpush1.bf16.msra.mxu0 0
  %1932 = vmatprep.subr.bf16.mxu0 0
  %1933 = vmatpush1.bf16.msra.mxu0 0
  %1934 = vmatprep.subr.bf16.mxu0 0
  %1935 = vmatpush1.bf16.msra.mxu0 0
  %1936 = vmatprep.mubr.bf16.mxu0 0
  %1937 = vmatmul.mubr.bf16.gmra.mrb[0].mxu0 %v1683
  %v1938 = vpop.f32.mrb[0].mxu0
  %v1939 = vadd.f32 %v1874, %v1938
  %v1940 = vpop.f32.mrb[0].mxu0
  %v1941 = vpop.f32.mrb[0].mxu0
  %v1942 = vadd.f32 %v1877, %v1941
  %v1943 = vpop.f32.mrb[0].mxu0
  %1944 = vdwg.mxu0
  %1945 = vmatprep.subr.bf16.mxu0 0
  %1946 = vmatpush1.bf16.msra.mxu0 %v1675
  %1947 = vmatprep.subr.bf16.mxu0 0
  %1948 = vmatpush1.bf16.msra.mxu0 %v1676
  %1949 = vmatprep.subr.bf16.mxu0 0
  %1950 = vmatpush1.bf16.msra.mxu0 %v1677
  %1951 = vmatprep.subr.bf16.mxu0 0
  %1952 = vmatpush1.bf16.msra.mxu0 %v1686
  %1953 = vmatprep.subr.bf16.mxu0 0
  %1954 = vmatpush1.bf16.msra.mxu0 0
  %1955 = vmatprep.subr.bf16.mxu0 0
  %1956 = vmatpush1.bf16.msra.mxu0 0
  %1957 = vmatprep.subr.bf16.mxu0 0
  %1958 = vmatpush1.bf16.msra.mxu0 0
  %1959 = vmatprep.subr.bf16.mxu0 0
  %1960 = vmatpush1.bf16.msra.mxu0 0
  %1961 = vmatprep.subr.bf16.mxu0 0
  %1962 = vmatpush1.bf16.msra.mxu0 0
  %1963 = vmatprep.subr.bf16.mxu0 0
  %1964 = vmatpush1.bf16.msra.mxu0 0
  %1965 = vmatprep.subr.bf16.mxu0 0
  %1966 = vmatpush1.bf16.msra.mxu0 0
  %1967 = vmatprep.subr.bf16.mxu0 0
  %1968 = vmatpush1.bf16.msra.mxu0 0
  %1969 = vmatprep.subr.bf16.mxu0 0
  %1970 = vmatpush1.bf16.msra.mxu0 0
  %1971 = vmatprep.subr.bf16.mxu0 0
  %1972 = vmatpush1.bf16.msra.mxu0 0
  %1973 = vmatprep.subr.bf16.mxu0 0
  %1974 = vmatpush1.bf16.msra.mxu0 0
  %1975 = vmatprep.subr.bf16.mxu0 0
  %1976 = vmatpush1.bf16.msra.mxu0 0
  %1977 = vmatprep.mubr.bf16.mxu0 0
  %1978 = vmatmul.mubr.bf16.gmra.mrb[0].mxu0 %v1834
  %v1979 = vpop.f32.mrb[0].mxu0
  %v1980 = vadd.f32 0.0, %v1979
  %v1981 = vpop.f32.mrb[0].mxu0
  %v1982 = vpop.f32.mrb[0].mxu0
  %v1983 = vadd.f32 0.0, %v1982
  %v1984 = vpop.f32.mrb[0].mxu0
  %1985 = vdwg.mxu0
  %1986 = vmatprep.subr.bf16.mxu0 0
  %1987 = vmatpush1.bf16.msra.mxu0 %v1743
  %1988 = vmatprep.subr.bf16.mxu0 0
  %1989 = vmatpush1.bf16.msra.mxu0 %v1744
  %1990 = vmatprep.subr.bf16.mxu0 0
  %1991 = vmatpush1.bf16.msra.mxu0 %v1745
  %1992 = vmatprep.subr.bf16.mxu0 0
  %1993 = vmatpush1.bf16.msra.mxu0 %v1754
  %1994 = vmatprep.subr.bf16.mxu0 0
  %1995 = vmatpush1.bf16.msra.mxu0 0
  %1996 = vmatprep.subr.bf16.mxu0 0
  %1997 = vmatpush1.bf16.msra.mxu0 0
  %1998 = vmatprep.subr.bf16.mxu0 0
  %1999 = vmatpush1.bf16.msra.mxu0 0
  %2000 = vmatprep.subr.bf16.mxu0 0
  %2001 = vmatpush1.bf16.msra.mxu0 0
  %2002 = vmatprep.subr.bf16.mxu0 0
  %2003 = vmatpush1.bf16.msra.mxu0 0
  %2004 = vmatprep.subr.bf16.mxu0 0
  %2005 = vmatpush1.bf16.msra.mxu0 0
  %2006 = vmatprep.subr.bf16.mxu0 0
  %2007 = vmatpush1.bf16.msra.mxu0 0
  %2008 = vmatprep.subr.bf16.mxu0 0
  %2009 = vmatpush1.bf16.msra.mxu0 0
  %2010 = vmatprep.subr.bf16.mxu0 0
  %2011 = vmatpush1.bf16.msra.mxu0 0
  %2012 = vmatprep.subr.bf16.mxu0 0
  %2013 = vmatpush1.bf16.msra.mxu0 0
  %2014 = vmatprep.subr.bf16.mxu0 0
  %2015 = vmatpush1.bf16.msra.mxu0 0
  %2016 = vmatprep.subr.bf16.mxu0 0
  %2017 = vmatpush1.bf16.msra.mxu0 0
  %2018 = vmatprep.mubr.bf16.mxu0 0
  %2019 = vmatmul.mubr.bf16.gmra.mrb[0].mxu0 %v1683
  %v2020 = vpop.f32.mrb[0].mxu0
  %v2021 = vadd.f32 %v1980, %v2020
  %v2022 = vpop.f32.mrb[0].mxu0
  %v2023 = vpop.f32.mrb[0].mxu0
  %v2024 = vadd.f32 %v1983, %v2023
  %v2025 = vpop.f32.mrb[0].mxu0
  %2026 = vdwg.mxu0
  %v2028 = vsel %vm691, %v1642, 0
  %2030 = vmatprep.subr.bf16.mxu0 0
  %2031 = vmatpush1.bf16.msra.mxu0 %v1826
  %2032 = vmatprep.subr.bf16.mxu0 0
  %2033 = vmatpush1.bf16.msra.mxu0 %v1827
  %2034 = vmatprep.subr.bf16.mxu0 0
  %2035 = vmatpush1.bf16.msra.mxu0 %v1828
  %2036 = vmatprep.subr.bf16.mxu0 0
  %2037 = vmatpush1.bf16.msra.mxu0 %v1837
  %2038 = vmatprep.subr.bf16.mxu0 0
  %2039 = vmatpush1.bf16.msra.mxu0 0
  %2040 = vmatprep.subr.bf16.mxu0 0
  %2041 = vmatpush1.bf16.msra.mxu0 0
  %2042 = vmatprep.subr.bf16.mxu0 0
  %2043 = vmatpush1.bf16.msra.mxu0 0
  %2044 = vmatprep.subr.bf16.mxu0 0
  %2045 = vmatpush1.bf16.msra.mxu0 0
  %2046 = vmatprep.subr.bf16.mxu0 0
  %2047 = vmatpush1.bf16.msra.mxu0 0
  %2048 = vmatprep.subr.bf16.mxu0 0
  %2049 = vmatpush1.bf16.msra.mxu0 0
  %2050 = vmatprep.subr.bf16.mxu0 0
  %2051 = vmatpush1.bf16.msra.mxu0 0
  %2052 = vmatprep.subr.bf16.mxu0 0
  %2053 = vmatpush1.bf16.msra.mxu0 0
  %2054 = vmatprep.subr.bf16.mxu0 0
  %2055 = vmatpush1.bf16.msra.mxu0 0
  %2056 = vmatprep.subr.bf16.mxu0 0
  %2057 = vmatpush1.bf16.msra.mxu0 0
  %2058 = vmatprep.subr.bf16.mxu0 0
  %2059 = vmatpush1.bf16.msra.mxu0 0
  %2060 = vmatprep.subr.bf16.mxu0 0
  %2061 = vmatpush1.bf16.msra.mxu0 0
  %2062 = vmatprep.mubr.bf16.mxu0 0
  %2063 = vmatmul.mubr.bf16.gmra.mrb[0].mxu0 %v2028
  %v2064 = vpop.f32.mrb[0].mxu0
  %v2065 = vadd.f32 0.0, %v2064
  %v2066 = vpop.f32.mrb[0].mxu0
  %v2067 = vpop.f32.mrb[0].mxu0
  %v2068 = vadd.f32 0.0, %v2067
  %v2069 = vpop.f32.mrb[0].mxu0
  %2070 = vdwg.mxu0
  %2071 = vmatprep.subr.bf16.mxu0 0
  %2072 = vmatpush1.bf16.msra.mxu0 %v1894
  %2073 = vmatprep.subr.bf16.mxu0 0
  %2074 = vmatpush1.bf16.msra.mxu0 %v1895
  %2075 = vmatprep.subr.bf16.mxu0 0
  %2076 = vmatpush1.bf16.msra.mxu0 %v1896
  %2077 = vmatprep.subr.bf16.mxu0 0
  %2078 = vmatpush1.bf16.msra.mxu0 %v1902
  %2079 = vmatprep.subr.bf16.mxu0 0
  %2080 = vmatpush1.bf16.msra.mxu0 0
  %2081 = vmatprep.subr.bf16.mxu0 0
  %2082 = vmatpush1.bf16.msra.mxu0 0
  %2083 = vmatprep.subr.bf16.mxu0 0
  %2084 = vmatpush1.bf16.msra.mxu0 0
  %2085 = vmatprep.subr.bf16.mxu0 0
  %2086 = vmatpush1.bf16.msra.mxu0 0
  %2087 = vmatprep.subr.bf16.mxu0 0
  %2088 = vmatpush1.bf16.msra.mxu0 0
  %2089 = vmatprep.subr.bf16.mxu0 0
  %2090 = vmatpush1.bf16.msra.mxu0 0
  %2091 = vmatprep.subr.bf16.mxu0 0
  %2092 = vmatpush1.bf16.msra.mxu0 0
  %2093 = vmatprep.subr.bf16.mxu0 0
  %2094 = vmatpush1.bf16.msra.mxu0 0
  %2095 = vmatprep.subr.bf16.mxu0 0
  %2096 = vmatpush1.bf16.msra.mxu0 0
  %2097 = vmatprep.subr.bf16.mxu0 0
  %2098 = vmatpush1.bf16.msra.mxu0 0
  %2099 = vmatprep.subr.bf16.mxu0 0
  %2100 = vmatpush1.bf16.msra.mxu0 0
  %2101 = vmatprep.subr.bf16.mxu0 0
  %2102 = vmatpush1.bf16.msra.mxu0 0
  %2103 = vmatprep.mubr.bf16.mxu0 0
  %2104 = vmatmul.mubr.bf16.gmra.mrb[0].mxu0 %v1834
  %v2105 = vpop.f32.mrb[0].mxu0
  %v2106 = vadd.f32 %v2065, %v2105
  %v2107 = vpop.f32.mrb[0].mxu0
  %v2108 = vpop.f32.mrb[0].mxu0
  %v2109 = vadd.f32 %v2068, %v2108
  %v2110 = vpop.f32.mrb[0].mxu0
  %2111 = vdwg.mxu0
  %v2112 = vld [vmem:[%s15] sm:$0x1]
  %v2114 = vlaneseq
  %v2115 = vshrl.u32 %v2114, 7
  %v2116 = vsub.s32 0, %v2115
  %v2117 = vrot.slane %v2112, %v2116
  %v2119 = vadd.f32 %v1791, %v2117
  %v2120 = vadd.f32 %v1794, %v2117
  %v2121 = vadd.f32 %v1939, %v2117
  %v2122 = vadd.f32 %v1942, %v2117
  %v2123 = vadd.f32 %v2021, %v2117
  %v2124 = vadd.f32 %v2024, %v2117
  %v2125 = vadd.f32 %v2106, %v2117
  %v2126 = vadd.f32 %v2109, %v2117
  %2129 = vrot.lane.b32.xlu0 %v2121, 32
  %v2130 = vpop.permute.xlu0 %2129
  %2131 = vrot.lane.b32.xlu0 %v2122, 32
  %v2132 = vpop.permute.xlu0 %2131
  %2137 = vrot.lane.b32.xlu0 %v2123, 64
  %v2138 = vpop.permute.xlu0 %2137
  %2139 = vrot.lane.b32.xlu0 %v2124, 64
  %v2140 = vpop.permute.xlu0 %2139
  %2145 = vrot.lane.b32.xlu0 %v2125, 96
  %v2146 = vpop.permute.xlu0 %2145
  %2147 = vrot.lane.b32.xlu0 %v2126, 96
  %v2148 = vpop.permute.xlu0 %2147
  %v2151 = vsel %vm1216, %v2119, %v2130
  %v2152 = vsel %vm1216, %v2120, %v2132
  %vm2153 = vcmask 523264
  %v2154 = vsel %vm2153, %v2151, %v2138
  %v2155 = vsel %vm2153, %v2152, %v2140
  %v2156 = vsel %vm697, %v2154, %v2146
  %v2157 = vsel %vm697, %v2155, %v2148
  %v2158 = vxor.u32 %v2156, 2147483648
  %v2159 = vxor.u32 %v2157, 2147483648
  %v2160 = vmul.f32 %v2158, 1.442695
  %v2161 = vpow.pop %v2160
  %v2162 = vmul.f32 %v2159, 1.442695
  %v2163 = vpow.pop %v2162
  %v2164 = vadd.f32 %v2161, 1.0
  %v2165 = vadd.f32 %v2163, 1.0
  %v2166 = vrcp.pop %v2164
  %v2167 = vmul.f32 1.0, %v2166
  %v2168 = vrcp.pop %v2165
  %v2169 = vmul.f32 1.0, %v2168
  %2170 = vst [vmem:[%s16] sm:$0xff] %v2167
  %2171 = vst [vmem:[%s16 + $0x8] sm:$0x3f] %v2169
  // Predicated region
  $region66: #{vae_forward.1} parent=0 // pred_check
    _
  $region67: #{vae_forward.1} parent=0 // pred_check_branch
    %2173 = sbr.rel (0) target = $region69
  $region68: #{vae_forward.1} parent=0 // pred_region
    _
  $region69: #{vae_forward.1} parent=0 // pred_fallthru
    _
  // Predicated region
  $region70: #{vae_forward.1} parent=0 // pred_check
    _
  $region71: #{vae_forward.1} parent=0 // pred_check_branch
    %2175 = sbr.rel (0) target = $region73
  $region72: #{vae_forward.1} parent=0 // pred_region
    _
  $region73: #{vae_forward.1} parent=0 // pred_fallthru
    _
  // Predicated region
  $region74: #{vae_forward.1} parent=0 // pred_check
    _
  $region75: #{vae_forward.1} parent=0 // pred_check_branch
    %2177 = sbr.rel (0) target = $region77
  $region76: #{vae_forward.1} parent=0 // pred_region
    _
  $region77: #{vae_forward.1} parent=0 // pred_fallthru
    _
  // Predicated region
  $region78: #{vae_forward.1} parent=0 // pred_check
    _
  $region79: #{vae_forward.1} parent=0 // pred_check_branch
    %2179 = sbr.rel (0) target = $region81
  $region80: #{vae_forward.1} parent=0 // pred_region
    _
  $region81: #{vae_forward.1} parent=0 // pred_fallthru
    _

</llo_original>
